<compile_context>
chip_gen: v5e
topology: v5e:2x2
jax: 0.10.0
libtpu: 0.0.40
codegen_flags: <defaults>
</compile_context>

<pallas_src>
import functools

import jax
import jax.numpy as jnp
from jax.experimental import pallas as pl
from jax.experimental.pallas import tpu as pltpu

BN_EPS = 1e-5
LANE = 128


def _round_up(x, m):
    return (x + m - 1) // m * m


def _divisors(n):
    ds = set()
    i = 1
    while i * i <= n:
        if n % i == 0:
            ds.add(i)
            ds.add(n // i)
        i += 1
    return sorted(ds, reverse=True)


def _vmem_capacity_bytes():
    try:
        info = pltpu.get_tpu_info()
        cap = int(getattr(info, "vmem_capacity_bytes", 0) or 0)
        if cap > 0:
            return cap
    except Exception:
        pass
    return 64 << 20  # conservative (v7x-sized) default


def _choose_rows(total, row_bytes, row_budget, align_unit=1, cap_rows=8192):
    """Largest divisor of `total` whose per-tile live bytes fit `row_budget`.

    Prefers tiles where (rows * align_unit) is a multiple of 16 (bf16 sublane packing),
    then 8 (f32), then anything — so odd/prime sizes still compile with a small tile
    instead of falling back to one giant block that blows the VMEM limit.
    """
    max_rows = max(1, min(cap_rows, row_budget // max(row_bytes, 1)))
    divs = _divisors(total)
    for mult in (16, 8, 1):
        for d in divs:
            if d <= max_rows and (d * align_unit) % mult == 0:
                return d
    return 1


def _vmem_limit_bytes(live_bytes, cap):
    # Always >= the chosen double-buffered live set (+ headroom), <= ~90% of physical.
    return int(min(int(cap * 0.9), max(16 << 20, live_bytes + (4 << 20))))


def _partial8(v, rows):
    """(rows, C) f32 -> (8, C) partial column sums (each of the 8 rows covers rows/8)."""
    c = v.shape[-1]
    if rows % 8 == 0:
        return jnp.sum(v.reshape(8, rows // 8, c), axis=1)
    full = jnp.sum(v, axis=0, keepdims=True)
    row = jax.lax.broadcasted_iota(jnp.int32, (8, c), 0)
    return jnp.where(row == 0, full, 0.0)


# ----------------------------------------------------------------------------------
# Pass 1 kernels: conv (single K=9*Cin MXU matmul) + bias -> per-tile partial stats.
# ----------------------------------------------------------------------------------
def _stats_kernel(x_ref, w_ref, b_ref, s_ref, ss_ref, *, tm):
    # recompute path: no conv intermediate is written at all.
    acc = jnp.dot(x_ref[...], w_ref[...], preferred_element_type=jnp.float32)
    acc = acc + b_ref[...]
    s_ref[...] = _partial8(acc, tm)
    ss_ref[...] = _partial8(acc * acc, tm)


def _conv_stats_kernel(x_ref, w_ref, b_ref, y_ref, s_ref, ss_ref, *, tm):
    # intermediate path: conv stored once in bf16; stats stay f32.
    acc = jnp.dot(x_ref[...], w_ref[...], preferred_element_type=jnp.float32)
    acc = acc + b_ref[...]
    y_ref[...] = acc.astype(jnp.bfloat16)
    s_ref[...] = _partial8(acc, tm)
    ss_ref[...] = _partial8(acc * acc, tm)


# ----------------------------------------------------------------------------------
# Pass 2 kernels.
# ----------------------------------------------------------------------------------
def _conv_bn_pool_kernel(x_ref, w_ref, sc_ref, sh_ref, o_ref, *, tr, wo, cpad):
    # recompute + pool: conv -> BN (bias folded into shift) -> ReLU -> 2x2 max pool.
    wp = wo // 2
    acc = jnp.dot(x_ref[...], w_ref[...], preferred_element_type=jnp.float32)
    y = jnp.maximum(acc * sc_ref[...] + sh_ref[...], 0.0)        # (tr*2*wo, cpad)
    y = y.reshape(tr * 2, wp, 2, cpad)
    yw = jnp.maximum(y[:, :, 0, :], y[:, :, 1, :])               # pool over W pairs
    yw = yw.reshape(tr, 2, wp, cpad)
    o = jnp.maximum(yw[:, 0], yw[:, 1])                          # pool over H pairs
    o_ref[...] = o.reshape(tr * wp, cpad)


def _conv_bn_kernel(x_ref, w_ref, sc_ref, sh_ref, o_ref):
    # recompute, no pool.
    acc = jnp.dot(x_ref[...], w_ref[...], preferred_element_type=jnp.float32)
    o_ref[...] = jnp.maximum(acc * sc_ref[...] + sh_ref[...], 0.0)


def _bn_pool_kernel(y_ref, sc_ref, sh_ref, o_ref, *, cpad):
    # intermediate + pool: y block (TR, 2, W2, 2*Cpad) bf16; lane halves are the even/odd
    # W columns, axis 1 is the even/odd H rows of each 2x2 window.
    y = y_ref[...].astype(jnp.float32)
    sc = sc_ref[...]
    sh = sh_ref[...]
    ye = jnp.maximum(y[:, :, :, :cpad] * sc + sh, 0.0)
    yo = jnp.maximum(y[:, :, :, cpad:] * sc + sh, 0.0)
    yw = jnp.maximum(ye, yo)                                     # pool over W pairs
    o_ref[...] = jnp.maximum(yw[:, 0], yw[:, 1])                 # pool over H pairs


def _bn_relu_kernel(y_ref, sc_ref, sh_ref, o_ref):
    # intermediate, no pool.
    o_ref[...] = jnp.maximum(
        y_ref[...].astype(jnp.float32) * sc_ref[...] + sh_ref[...], 0.0)


# ----------------------------------------------------------------------------------
# Wrapper
# ----------------------------------------------------------------------------------
def conv_block_forward(x_nchw, weight, bias, gamma, beta, *, padding=1, pool=True):
    """Forward pass of ConvBlock. x_nchw: (N, Cin, H, W) f32. Returns NCHW f32."""
    N, Cin, H, W = x_nchw.shape
    Cout = weight.shape[0]
    KH = KW = 3
    Ho = H + 2 * padding - KH + 1
    Wo = W + 2 * padding - KW + 1
    M = N * Ho * Wo
    K = KH * KW * Cin
    Cpad = _round_up(max(Cout, LANE), LANE)

    cap = _vmem_capacity_bytes()
    budget = cap // 2                              # per-pass double-buffered live budget

    # ---- host-side layout glue only (bf16 cast BEFORE transpose/pad; pure reshapes) ----
    x = jnp.transpose(x_nchw.astype(jnp.bfloat16), (0, 2, 3, 1))          # NHWC bf16
    xp = jnp.pad(x, ((0, 0), (padding, padding), (padding, padding), (0, 0)))
    cols = [xp[:, kh:kh + Ho, kw:kw + Wo, :] for kh in range(KH) for kw in range(KW)]
    im2col = jnp.concatenate(cols, axis=-1).reshape(M, K)                 # (M, 9*Cin) bf16
    # TODO(synk): build the 3x3 taps in-kernel from a halo'd NHWC row block (manual
    # make_async_copy of the padded input) so the im2col stream never hits HBM at all.

    w2 = jnp.transpose(weight, (2, 3, 1, 0)).reshape(K, Cout)             # (kh,kw,ci) x co
    w2 = jnp.pad(w2, ((0, 0), (0, Cpad - Cout))).astype(jnp.bfloat16)
    b_p = jnp.pad(bias.astype(jnp.float32), (0, Cpad - Cout)).reshape(1, Cpad)
    g_p = jnp.pad(gamma.astype(jnp.float32), (0, Cpad - Cout))
    bt_p = jnp.pad(beta.astype(jnp.float32), (0, Cpad - Cout))

    const_bytes = K * Cpad * 2 + 6 * Cpad * 4
    row_budget = max(budget - const_bytes, 1 << 20)

    # Small-Cin layers: re-reading the 9*Cin bf16 taps in pass 2 is cheaper than writing
    # and re-reading even a bf16 conv intermediate -> skip the intermediate entirely.
    recompute = (K * 2) <= (2 * Cpad * 2)

    # ------------- Pass 1: conv + bias -> per-tile partial channel sum / sumsq -------------
    p1_row_bytes = 2 * K * 2 + 3 * Cpad * 4 + (0 if recompute else 2 * Cpad * 2)
    TM1 = _choose_rows(M, p1_row_bytes, row_budget)
    gm1 = M // TM1
    live1 = TM1 * p1_row_bytes + const_bytes + 4 * 8 * Cpad * 4
    limit1 = _vmem_limit_bytes(live1, cap)

    x_spec = pl.BlockSpec((TM1, K), lambda i: (i, 0))
    w_spec = pl.BlockSpec((K, Cpad), lambda i: (0, 0))
    c_spec = pl.BlockSpec((1, Cpad), lambda i: (0, 0))
    p_spec = pl.BlockSpec((8, Cpad), lambda i: (i, 0))
    p_shape = jax.ShapeDtypeStruct((gm1 * 8, Cpad), jnp.float32)
    p1_params = pltpu.CompilerParams(dimension_semantics=("parallel",),
                                     vmem_limit_bytes=limit1)

    conv_bf16 = None
    if recompute:
        psum, pssq = pl.pallas_call(
            functools.partial(_stats_kernel, tm=TM1),
            out_shape=(p_shape, p_shape),
            grid=(gm1,),
            in_specs=[x_spec, w_spec, c_spec],
            out_specs=(p_spec, p_spec),
            compiler_params=p1_params,
        )(im2col, w2, b_p)
    else:
        conv_bf16, psum, pssq = pl.pallas_call(
            functools.partial(_conv_stats_kernel, tm=TM1),
            out_shape=(jax.ShapeDtypeStruct((M, Cpad), jnp.bfloat16), p_shape, p_shape),
            grid=(gm1,),
            in_specs=[x_spec, w_spec, c_spec],
            out_specs=(pl.BlockSpec((TM1, Cpad), lambda i: (i, 0)), p_spec, p_spec),
            compiler_params=p1_params,
        )(im2col, w2, b_p)

    # --------- BN batch stats -> scale / shift (tiny XLA reduction between the calls) ---------
    inv_n = 1.0 / float(M)
    mean = jnp.sum(psum, axis=0) * inv_n
    var = jnp.maximum(jnp.sum(pssq, axis=0) * inv_n - mean * mean, 0.0)
    scale = g_p * jax.lax.rsqrt(var + BN_EPS)
    shift = bt_p - mean * scale                          # applied to conv + bias
    shift_fused = shift + b_p.reshape(Cpad) * scale      # conv bias folded in (recompute)
    scale = scale.reshape(1, Cpad)
    shift = shift.reshape(1, Cpad)
    shift_fused = shift_fused.reshape(1, Cpad)
    # Padded lanes: weight/bias/gamma/beta columns are 0 -> scale = 0, shift = 0 -> output 0.

    s_spec = pl.BlockSpec((1, Cpad), lambda i: (0, 0))

    # ------------- Pass 2: (conv) + BN + ReLU (+ fused 2x2 MaxPool) -------------
    if pool:
        assert Ho % 2 == 0 and Wo % 2 == 0, "MaxPool2d(2) needs even spatial dims"
        NH2 = (N * Ho) // 2
        W2 = Wo // 2
        if recompute:
            per_tr = 2 * Wo * (2 * K * 2 + 2 * Cpad * 4) + W2 * Cpad * 8
            TR = _choose_rows(NH2, per_tr, row_budget, align_unit=W2, cap_rows=2048)
            gr = NH2 // TR
            limit2 = _vmem_limit_bytes(TR * per_tr + const_bytes, cap)
            rows_in, rows_out = TR * 2 * Wo, TR * W2
            pooled = pl.pallas_call(
                functools.partial(_conv_bn_pool_kernel, tr=TR, wo=Wo, cpad=Cpad),
                out_shape=jax.ShapeDtypeStruct((NH2 * W2, Cpad), jnp.float32),
                grid=(gr,),
                in_specs=[pl.BlockSpec((rows_in, K), lambda i: (i, 0)),
                          w_spec, s_spec, s_spec],
                out_specs=pl.BlockSpec((rows_out, Cpad), lambda i: (i, 0)),
                compiler_params=pltpu.CompilerParams(
                    dimension_semantics=("parallel",), vmem_limit_bytes=limit2),
            )(im2col, w2, scale, shift_fused)
        else:
            yv = conv_bf16.reshape(NH2, 2, W2, 2 * Cpad)     # pure metadata reshape
            per_tr = 2 * Wo * (2 * Cpad * 2 + Cpad * 8) + W2 * Cpad * 8
            TR = _choose_rows(NH2, per_tr, row_budget, cap_rows=2048)
            gr = NH2 // TR
            limit2 = _vmem_limit_bytes(TR * per_tr + const_bytes, cap)
            pooled = pl.pallas_call(
                functools.partial(_bn_pool_kernel, cpad=Cpad),
                out_shape=jax.ShapeDtypeStruct((NH2, W2, Cpad), jnp.float32),
                grid=(gr,),
                in_specs=[pl.BlockSpec((TR, 2, W2, 2 * Cpad), lambda i: (i, 0, 0, 0)),
                          s_spec, s_spec],
                out_specs=pl.BlockSpec((TR, W2, Cpad), lambda i: (i, 0, 0)),
                compiler_params=pltpu.CompilerParams(
                    dimension_semantics=("parallel",), vmem_limit_bytes=limit2),
            )(yv, scale, shift)
        out = pooled.reshape(N, Ho // 2, W2, Cpad)[:, :, :, :Cout]
    else:
        if recompute:
            p2_row_bytes = 2 * K * 2 + 2 * Cpad * 4 + 2 * Cpad * 4
            TM2 = _choose_rows(M, p2_row_bytes, row_budget)
            gm2 = M // TM2
            limit2 = _vmem_limit_bytes(TM2 * p2_row_bytes + const_bytes, cap)
            y2 = pl.pallas_call(
                _conv_bn_kernel,
                out_shape=jax.ShapeDtypeStruct((M, Cpad), jnp.float32),
                grid=(gm2,),
                in_specs=[pl.BlockSpec((TM2, K), lambda i: (i, 0)),
                          w_spec, s_spec, s_spec],
                out_specs=pl.BlockSpec((TM2, Cpad), lambda i: (i, 0)),
                compiler_params=pltpu.CompilerParams(
                    dimension_semantics=("parallel",), vmem_limit_bytes=limit2),
            )(im2col, w2, scale, shift_fused)
        else:
            p2_row_bytes = 2 * Cpad * 2 + 3 * Cpad * 4
            TM2 = _choose_rows(M, p2_row_bytes, row_budget)
            gm2 = M // TM2
            limit2 = _vmem_limit_bytes(TM2 * p2_row_bytes + const_bytes, cap)
            y2 = pl.pallas_call(
                _bn_relu_kernel,
                out_shape=jax.ShapeDtypeStruct((M, Cpad), jnp.float32),
                grid=(gm2,),
                in_specs=[pl.BlockSpec((TM2, Cpad), lambda i: (i, 0)), s_spec, s_spec],
                out_specs=pl.BlockSpec((TM2, Cpad), lambda i: (i, 0)),
                compiler_params=pltpu.CompilerParams(
                    dimension_semantics=("parallel",), vmem_limit_bytes=limit2),
            )(conv_bf16, scale, shift)
        out = y2.reshape(N, Ho, Wo, Cpad)[:, :, :, :Cout]

    # Transpose only the final (pooled / Cout-sliced, small) tensor back to NCHW.
    return jnp.transpose(out, (0, 3, 1, 2))


def reference_forward(x, weight, bias, gamma, beta, *, padding=1, pool=True):
    """Pure-JAX f32 reference matching PyTorch ConvBlock.forward (training-mode BN)."""
    conv = jax.lax.conv_general_dilated(
        x, weight, window_strides=(1, 1),
        padding=[(padding, padding), (padding, padding)],
        dimension_numbers=('NCHW', 'OIHW', 'NCHW'))
    conv = conv + bias.reshape(1, -1, 1, 1)
    mean = jnp.mean(conv, axis=(0, 2, 3), keepdims=True)
    var = jnp.mean(jnp.square(conv - mean), axis=(0, 2, 3), keepdims=True)
    y = (conv - mean) * jax.lax.rsqrt(var + BN_EPS)
    y = y * gamma.reshape(1, -1, 1, 1) + beta.reshape(1, -1, 1, 1)
    y = jnp.maximum(y, 0.0)
    if pool:
        y = jax.lax.reduce_window(y, -jnp.inf, jax.lax.max,
                                  (1, 1, 2, 2), (1, 1, 2, 2), 'VALID')
    return y


if __name__ == "__main__":
    # Small shapes consistent with ConvBlock(indim=4, outdim=8, pool=True).
    N, Cin, H, W = 2, 4, 16, 16
    Cout = 8

    key = jax.random.PRNGKey(0)
    kx, kw, kb = jax.random.split(key, 3)

    x = jax.random.normal(kx, (N, Cin, H, W), dtype=jnp.float32)
    weight = jax.random.normal(kw, (Cout, Cin, 3, 3), dtype=jnp.float32) * 0.1
    bias = jax.random.normal(kb, (Cout,), dtype=jnp.float32) * 0.01
    gamma = jnp.ones((Cout,), dtype=jnp.float32)   # BN weight
    beta = jnp.zeros((Cout,), dtype=jnp.float32)   # BN bias

    fwd = jax.jit(functools.partial(conv_block_forward, padding=1, pool=True))
    out = jax.block_until_ready(fwd(x, weight, bias, gamma, beta))
    assert out.shape == (N, Cout, H // 2, W // 2), out.shape

    ref = jax.block_until_ready(
        reference_forward(x, weight, bias, gamma, beta, padding=1, pool=True))
    # bf16 MXU operands / bf16 taps with f32 accumulation vs f32 XLA conv.
    err = float(jnp.max(jnp.abs(out - ref)))
    assert err < 5e-2, err

    print("KERNEL_OK")
</pallas_src>

<mosaic_0001>
module attributes {stable_mosaic.version = 11 : i64} {
  func.func @_conv_bn_pool_kernel(%arg0: i32, %arg1: memref<512x36xbf16, #tpu.memory_space<vmem>>, %arg2: memref<36x128xbf16, #tpu.memory_space<vmem>>, %arg3: memref<1x128xf32, #tpu.memory_space<vmem>>, %arg4: memref<1x128xf32, #tpu.memory_space<vmem>>, %arg5: memref<128x128xf32, #tpu.memory_space<vmem>>) attributes {dimension_semantics = [#tpu.dimension_semantics<parallel>], iteration_bounds = array<i64: 1>, scalar_prefetch = 0 : i64, scratch_operands = 0 : i64, tpu.core_type = #tpu.core_type<tc>, window_params = [{transform_indices = @transform_0, window_bounds = array<i64: 512, 36>}, {pipeline_mode = #tpu.pipeline_mode<synchronous>, transform_indices = @transform_1, window_bounds = array<i64: 36, 128>}, {pipeline_mode = #tpu.pipeline_mode<synchronous>, transform_indices = @transform_2, window_bounds = array<i64: 1, 128>}, {pipeline_mode = #tpu.pipeline_mode<synchronous>, transform_indices = @transform_3, window_bounds = array<i64: 1, 128>}, {transform_indices = @transform_4, window_bounds = array<i64: 128, 128>}]} {
    %c0 = arith.constant 0 : index
    %c0_0 = arith.constant 0 : index
    %0 = vector.load %arg1[%c0, %c0_0] : memref<512x36xbf16, #tpu.memory_space<vmem>>, vector<512x36xbf16>
    %c0_1 = arith.constant 0 : index
    %c0_2 = arith.constant 0 : index
    %1 = vector.load %arg2[%c0_1, %c0_2] : memref<36x128xbf16, #tpu.memory_space<vmem>>, vector<36x128xbf16>
    %cst = arith.constant dense<0.000000e+00> : vector<512x128xf32>
    %2 = tpu.matmul %0, %1, %cst {dimension_numbers = #tpu.dot_dimension_numbers<[1], [0], [0], [1], [0, 0, 1, 1], [], []>} : vector<512x36xbf16>, vector<36x128xbf16>, vector<512x128xf32> -> vector<512x128xf32>
    %c0_3 = arith.constant 0 : index
    %c0_4 = arith.constant 0 : index
    %3 = vector.load %arg3[%c0_3, %c0_4] : memref<1x128xf32, #tpu.memory_space<vmem>>, vector<1x128xf32>
    %4 = vector.broadcast %3 : vector<1x128xf32> to vector<512x128xf32>
    %5 = arith.mulf %2, %4 : vector<512x128xf32>
    %c0_5 = arith.constant 0 : index
    %c0_6 = arith.constant 0 : index
    %6 = vector.load %arg4[%c0_5, %c0_6] : memref<1x128xf32, #tpu.memory_space<vmem>>, vector<1x128xf32>
    %7 = vector.broadcast %6 : vector<1x128xf32> to vector<512x128xf32>
    %8 = arith.addf %5, %7 : vector<512x128xf32>
    %cst_7 = arith.constant 0.000000e+00 : f32
    %9 = vector.broadcast %cst_7 : f32 to vector<512x128xf32>
    %10 = arith.maximumf %8, %9 : vector<512x128xf32>
    %11 = vector.shape_cast %10 : vector<512x128xf32> to vector<32x8x2x128xf32>
    %12 = vector.extract_strided_slice %11 {offsets = [0, 0, 0, 0], sizes = [32, 8, 1, 128], strides = [1, 1, 1, 1]} : vector<32x8x2x128xf32> to vector<32x8x1x128xf32>
    %13 = vector.shape_cast %12 : vector<32x8x1x128xf32> to vector<32x8x128xf32>
    %14 = vector.extract_strided_slice %11 {offsets = [0, 0, 1, 0], sizes = [32, 8, 1, 128], strides = [1, 1, 1, 1]} : vector<32x8x2x128xf32> to vector<32x8x1x128xf32>
    %15 = vector.shape_cast %14 : vector<32x8x1x128xf32> to vector<32x8x128xf32>
    %16 = arith.maximumf %13, %15 : vector<32x8x128xf32>
    %17 = vector.shape_cast %16 : vector<32x8x128xf32> to vector<16x2x8x128xf32>
    %18 = vector.extract_strided_slice %17 {offsets = [0, 0, 0, 0], sizes = [16, 1, 8, 128], strides = [1, 1, 1, 1]} : vector<16x2x8x128xf32> to vector<16x1x8x128xf32>
    %19 = vector.shape_cast %18 : vector<16x1x8x128xf32> to vector<16x8x128xf32>
    %20 = vector.extract_strided_slice %17 {offsets = [0, 1, 0, 0], sizes = [16, 1, 8, 128], strides = [1, 1, 1, 1]} : vector<16x2x8x128xf32> to vector<16x1x8x128xf32>
    %21 = vector.shape_cast %20 : vector<16x1x8x128xf32> to vector<16x8x128xf32>
    %22 = arith.maximumf %19, %21 : vector<16x8x128xf32>
    %23 = vector.shape_cast %22 : vector<16x8x128xf32> to vector<128x128xf32>
    %c0_8 = arith.constant 0 : index
    %c0_9 = arith.constant 0 : index
    %24 = vector.load %arg5[%c0_8, %c0_9] : memref<128x128xf32, #tpu.memory_space<vmem>>, vector<128x128xf32>
    tpu.vector_store %arg5[%c0_8, %c0_9], %23 {strides = array<i32>} : memref<128x128xf32, #tpu.memory_space<vmem>>, vector<128x128xf32>,
    return
  }
  func.func @transform_0(%arg0: i32) -> (i32, i32) {
    %c0_i32 = arith.constant 0 : i32
    %c0_i32_0 = arith.constant 0 : i32
    return %arg0, %c0_i32 : i32, i32
  }
  func.func @transform_1(%arg0: i32) -> (i32, i32) {
    %c0_i32 = arith.constant 0 : i32
    %c0_i32_0 = arith.constant 0 : i32
    %c0_i32_1 = arith.constant 0 : i32
    return %c0_i32, %c0_i32_0 : i32, i32
  }
  func.func @transform_2(%arg0: i32) -> (i32, i32) {
    %c0_i32 = arith.constant 0 : i32
    %c0_i32_0 = arith.constant 0 : i32
    %c0_i32_1 = arith.constant 0 : i32
    return %c0_i32, %c0_i32_0 : i32, i32
  }
  func.func @transform_3(%arg0: i32) -> (i32, i32) {
    %c0_i32 = arith.constant 0 : i32
    %c0_i32_0 = arith.constant 0 : i32
    %c0_i32_1 = arith.constant 0 : i32
    return %c0_i32, %c0_i32_0 : i32, i32
  }
  func.func @transform_4(%arg0: i32) -> (i32, i32) {
    %c0_i32 = arith.constant 0 : i32
    %c0_i32_0 = arith.constant 0 : i32
    return %arg0, %c0_i32 : i32, i32
  }
}

module attributes {stable_mosaic.version = 11 : i64} {
  func.func @_stats_kernel(%arg0: i32, %arg1: memref<512x36xbf16, #tpu.memory_space<vmem>>, %arg2: memref<36x128xbf16, #tpu.memory_space<vmem>>, %arg3: memref<1x128xf32, #tpu.memory_space<vmem>>, %arg4: memref<8x128xf32, #tpu.memory_space<vmem>>, %arg5: memref<8x128xf32, #tpu.memory_space<vmem>>) attributes {dimension_semantics = [#tpu.dimension_semantics<parallel>], iteration_bounds = array<i64: 1>, scalar_prefetch = 0 : i64, scratch_operands = 0 : i64, tpu.core_type = #tpu.core_type<tc>, window_params = [{transform_indices = @transform_0, window_bounds = array<i64: 512, 36>}, {pipeline_mode = #tpu.pipeline_mode<synchronous>, transform_indices = @transform_1, window_bounds = array<i64: 36, 128>}, {pipeline_mode = #tpu.pipeline_mode<synchronous>, transform_indices = @transform_2, window_bounds = array<i64: 1, 128>}, {transform_indices = @transform_3, window_bounds = array<i64: 8, 128>}, {transform_indices = @transform_4, window_bounds = array<i64: 8, 128>}]} {
    %c0 = arith.constant 0 : index
    %c0_0 = arith.constant 0 : index
    %0 = vector.load %arg1[%c0, %c0_0] : memref<512x36xbf16, #tpu.memory_space<vmem>>, vector<512x36xbf16>
    %c0_1 = arith.constant 0 : index
    %c0_2 = arith.constant 0 : index
    %1 = vector.load %arg2[%c0_1, %c0_2] : memref<36x128xbf16, #tpu.memory_space<vmem>>, vector<36x128xbf16>
    %cst = arith.constant dense<0.000000e+00> : vector<512x128xf32>
    %2 = tpu.matmul %0, %1, %cst {dimension_numbers = #tpu.dot_dimension_numbers<[1], [0], [0], [1], [0, 0, 1, 1], [], []>} : vector<512x36xbf16>, vector<36x128xbf16>, vector<512x128xf32> -> vector<512x128xf32>
    %c0_3 = arith.constant 0 : index
    %c0_4 = arith.constant 0 : index
    %3 = vector.load %arg3[%c0_3, %c0_4] : memref<1x128xf32, #tpu.memory_space<vmem>>, vector<1x128xf32>
    %4 = vector.broadcast %3 : vector<1x128xf32> to vector<512x128xf32>
    %5 = arith.addf %2, %4 : vector<512x128xf32>
    %6 = vector.shape_cast %5 : vector<512x128xf32> to vector<8x64x128xf32>
    %cst_5 = arith.constant dense<0.000000e+00> : vector<8x128xf32>
    %7 = vector.multi_reduction <add>, %6, %cst_5 [1] : vector<8x64x128xf32> to vector<8x128xf32>
    %c0_6 = arith.constant 0 : index
    %c0_7 = arith.constant 0 : index
    %8 = vector.load %arg4[%c0_6, %c0_7] : memref<8x128xf32, #tpu.memory_space<vmem>>, vector<8x128xf32>
    tpu.vector_store %arg4[%c0_6, %c0_7], %7 {strides = array<i32>} : memref<8x128xf32, #tpu.memory_space<vmem>>, vector<8x128xf32>,
    %9 = arith.mulf %5, %5 : vector<512x128xf32>
    %10 = vector.shape_cast %9 : vector<512x128xf32> to vector<8x64x128xf32>
    %cst_8 = arith.constant dense<0.000000e+00> : vector<8x128xf32>
    %11 = vector.multi_reduction <add>, %10, %cst_8 [1] : vector<8x64x128xf32> to vector<8x128xf32>
    %c0_9 = arith.constant 0 : index
    %c0_10 = arith.constant 0 : index
    %12 = vector.load %arg5[%c0_9, %c0_10] : memref<8x128xf32, #tpu.memory_space<vmem>>, vector<8x128xf32>
    tpu.vector_store %arg5[%c0_9, %c0_10], %11 {strides = array<i32>} : memref<8x128xf32, #tpu.memory_space<vmem>>, vector<8x128xf32>,
    return
  }
  func.func @transform_0(%arg0: i32) -> (i32, i32) {
    %c0_i32 = arith.constant 0 : i32
    %c0_i32_0 = arith.constant 0 : i32
    return %arg0, %c0_i32 : i32, i32
  }
  func.func @transform_1(%arg0: i32) -> (i32, i32) {
    %c0_i32 = arith.constant 0 : i32
    %c0_i32_0 = arith.constant 0 : i32
    %c0_i32_1 = arith.constant 0 : i32
    return %c0_i32, %c0_i32_0 : i32, i32
  }
  func.func @transform_2(%arg0: i32) -> (i32, i32) {
    %c0_i32 = arith.constant 0 : i32
    %c0_i32_0 = arith.constant 0 : i32
    %c0_i32_1 = arith.constant 0 : i32
    return %c0_i32, %c0_i32_0 : i32, i32
  }
  func.func @transform_3(%arg0: i32) -> (i32, i32) {
    %c0_i32 = arith.constant 0 : i32
    %c0_i32_0 = arith.constant 0 : i32
    return %arg0, %c0_i32 : i32, i32
  }
  func.func @transform_4(%arg0: i32) -> (i32, i32) {
    %c0_i32 = arith.constant 0 : i32
    %c0_i32_0 = arith.constant 0 : i32
    return %arg0, %c0_i32 : i32, i32
  }
}

</mosaic_0001>

<llo_original>
// kernel: conv_block_forward.2
$region0: #{conv_block_forward.2}
  #allocation0 [shape = 'u32[]', space=smem, size = 0x4, offset = 0x4, fixed_abs, tag = 'smem constant byte address 0x4 - core index']
  #allocation1 [shape = 'u32[72,128]{1,0:T(1,128)}', space=vmem, size = 0x9000, scoped, tag = 'internal scratch']
  %s0 = inlined_call_operand.vmem [shape: bf16[512,36], index: 0, kind: input, shape index: {}]
  %s1 = inlined_call_operand.vmem [shape: bf16[36,128], index: 1, kind: input, shape index: {}]
  %s2 = inlined_call_operand.vmem [shape: f32[1,128], index: 2, kind: input, shape index: {}]
  %s3 = inlined_call_operand.vmem [shape: f32[8,128], index: 3, kind: output, shape index: {0}]
  %s4 = inlined_call_operand.vmem [shape: f32[8,128], index: 4, kind: output, shape index: {1}]
  %5 = xla_tuple %s3, %s4
  %s6 = sld [smem:[#allocation0]]
  $region30: #{conv_block_forward.2} parent=0
    _
  %s8 = ssub.s32 1, %s6
  %s9 = scalar_select 0, %s8, %s6
  // Predicated region
  $region2: #{conv_block_forward.2} parent=0 // pred_check
    _
  $region3: #{conv_block_forward.2} parent=0 // pred_check_branch
    %11 = sbr.rel (0) target = $region5
  $region4: #{conv_block_forward.2} parent=0 // pred_region
    _
  $region5: #{conv_block_forward.2} parent=0 // pred_fallthru
    _
  // Predicated region
  $region6: #{conv_block_forward.2} parent=0 // pred_check
    _
  $region7: #{conv_block_forward.2} parent=0 // pred_check_branch
    %13 = sbr.rel (0) target = $region9
  $region8: #{conv_block_forward.2} parent=0 // pred_region
    _
  $region9: #{conv_block_forward.2} parent=0 // pred_fallthru
    _
  // Predicated region
  $region10: #{conv_block_forward.2} parent=0 // pred_check
    _
  $region11: #{conv_block_forward.2} parent=0 // pred_check_branch
    %15 = sbr.rel (0) target = $region13
  $region12: #{conv_block_forward.2} parent=0 // pred_region
    _
  $region13: #{conv_block_forward.2} parent=0 // pred_fallthru
    _
  %v17 = vld [vmem:[%s0] sm:$0xf]
  %v18 = vld [vmem:[%s0 + $0x4] sm:$0xf]
  %v19 = vld [vmem:[%s0 + $0x8] sm:$0xf]
  %v20 = vld [vmem:[%s0 + $0xc] sm:$0xf]
  %v21 = vld [vmem:[%s0 + $0x10] sm:$0xf]
  %v22 = vld [vmem:[%s0 + $0x14] sm:$0xf]
  %v23 = vld [vmem:[%s0 + $0x18] sm:$0xf]
  %v24 = vld [vmem:[%s0 + $0x1c] sm:$0xf]
  %v25 = vld [vmem:[%s0 + $0x20] sm:$0xf]
  %v26 = vld [vmem:[%s0 + $0x24] sm:$0xf]
  %v27 = vld [vmem:[%s0 + $0x28] sm:$0xf]
  %v28 = vld [vmem:[%s0 + $0x2c] sm:$0xf]
  %v29 = vld [vmem:[%s0 + $0x30] sm:$0xf]
  %v30 = vld [vmem:[%s0 + $0x34] sm:$0xf]
  %v31 = vld [vmem:[%s0 + $0x38] sm:$0xf]
  %v32 = vld [vmem:[%s0 + $0x3c] sm:$0xf]
  %v33 = vld [vmem:[%s0 + $0x40] sm:$0xf]
  %v34 = vld [vmem:[%s0 + $0x44] sm:$0xf]
  %v35 = vld [vmem:[%s0 + $0x48] sm:$0xf]
  %v36 = vld [vmem:[%s0 + $0x4c] sm:$0xf]
  %v37 = vld [vmem:[%s0 + $0x50] sm:$0xf]
  %v38 = vld [vmem:[%s0 + $0x54] sm:$0xf]
  %v39 = vld [vmem:[%s0 + $0x58] sm:$0xf]
  %v40 = vld [vmem:[%s0 + $0x5c] sm:$0xf]
  %v41 = vld [vmem:[%s0 + $0x60] sm:$0xf]
  %v42 = vld [vmem:[%s0 + $0x64] sm:$0xf]
  %v43 = vld [vmem:[%s0 + $0x68] sm:$0xf]
  %v44 = vld [vmem:[%s0 + $0x6c] sm:$0xf]
  %v45 = vld [vmem:[%s0 + $0x70] sm:$0xf]
  %v46 = vld [vmem:[%s0 + $0x74] sm:$0xf]
  %v47 = vld [vmem:[%s0 + $0x78] sm:$0xf]
  %v48 = vld [vmem:[%s0 + $0x7c] sm:$0xf]
  %v49 = vld [vmem:[%s0 + $0x80] sm:$0xf]
  %v50 = vld [vmem:[%s0 + $0x84] sm:$0xf]
  %v51 = vld [vmem:[%s0 + $0x88] sm:$0xf]
  %v52 = vld [vmem:[%s0 + $0x8c] sm:$0xf]
  %v53 = vld [vmem:[%s0 + $0x90] sm:$0xf]
  %v54 = vld [vmem:[%s0 + $0x94] sm:$0xf]
  %v55 = vld [vmem:[%s0 + $0x98] sm:$0xf]
  %v56 = vld [vmem:[%s0 + $0x9c] sm:$0xf]
  %v57 = vld [vmem:[%s0 + $0xa0] sm:$0xf]
  %v58 = vld [vmem:[%s0 + $0xa4] sm:$0xf]
  %v59 = vld [vmem:[%s0 + $0xa8] sm:$0xf]
  %v60 = vld [vmem:[%s0 + $0xac] sm:$0xf]
  %v61 = vld [vmem:[%s0 + $0xb0] sm:$0xf]
  %v62 = vld [vmem:[%s0 + $0xb4] sm:$0xf]
  %v63 = vld [vmem:[%s0 + $0xb8] sm:$0xf]
  %v64 = vld [vmem:[%s0 + $0xbc] sm:$0xf]
  %v65 = vld [vmem:[%s0 + $0xc0] sm:$0xf]
  %v66 = vld [vmem:[%s0 + $0xc4] sm:$0xf]
  %v67 = vld [vmem:[%s0 + $0xc8] sm:$0xf]
  %v68 = vld [vmem:[%s0 + $0xcc] sm:$0xf]
  %v69 = vld [vmem:[%s0 + $0xd0] sm:$0xf]
  %v70 = vld [vmem:[%s0 + $0xd4] sm:$0xf]
  %v71 = vld [vmem:[%s0 + $0xd8] sm:$0xf]
  %v72 = vld [vmem:[%s0 + $0xdc] sm:$0xf]
  %v73 = vld [vmem:[%s0 + $0xe0] sm:$0xf]
  %v74 = vld [vmem:[%s0 + $0xe4] sm:$0xf]
  %v75 = vld [vmem:[%s0 + $0xe8] sm:$0xf]
  %v76 = vld [vmem:[%s0 + $0xec] sm:$0xf]
  %v77 = vld [vmem:[%s0 + $0xf0] sm:$0xf]
  %v78 = vld [vmem:[%s0 + $0xf4] sm:$0xf]
  %v79 = vld [vmem:[%s0 + $0xf8] sm:$0xf]
  %v80 = vld [vmem:[%s0 + $0xfc] sm:$0xf]
  %v81 = vld [vmem:[%s1] sm:$0xf]
  %v82 = vld [vmem:[%s1 + $0x4] sm:$0xf]
  %v83 = vld [vmem:[%s1 + $0x8] sm:$0xf]
  %v84 = vld [vmem:[%s1 + $0xc] sm:$0xf]
  %v85 = vld [vmem:[%s1 + $0x10] sm:$0x3]
  %v86 = vld [vmem:[%s2] sm:$0x1]
  %v88 = vperm.slane %v86, 0
  %v154 = vunpack.c.l.b16 %v17
  %v155 = vunpack.c.l.b16 %v18
  %v156 = vunpack.c.l.b16 %v19
  %v157 = vunpack.c.l.b16 %v20
  %v158 = vunpack.c.l.b16 %v21
  %v159 = vunpack.c.l.b16 %v22
  %v160 = vunpack.c.l.b16 %v23
  %v161 = vunpack.c.l.b16 %v24
  %v162 = vunpack.c.l.b16 %v25
  %v163 = vunpack.c.l.b16 %v26
  %v164 = vunpack.c.l.b16 %v27
  %v165 = vunpack.c.l.b16 %v28
  %v166 = vunpack.c.l.b16 %v29
  %v167 = vunpack.c.l.b16 %v30
  %v168 = vunpack.c.l.b16 %v31
  %v169 = vunpack.c.l.b16 %v32
  %v170 = vunpack.c.l.b16 %v33
  %v171 = vunpack.c.l.b16 %v34
  %v172 = vunpack.c.l.b16 %v35
  %v173 = vunpack.c.l.b16 %v36
  %v174 = vunpack.c.l.b16 %v37
  %v175 = vunpack.c.l.b16 %v38
  %v176 = vunpack.c.l.b16 %v39
  %v177 = vunpack.c.l.b16 %v40
  %v178 = vunpack.c.l.b16 %v41
  %v179 = vunpack.c.l.b16 %v42
  %v180 = vunpack.c.l.b16 %v43
  %v181 = vunpack.c.l.b16 %v44
  %v182 = vunpack.c.l.b16 %v45
  %v183 = vunpack.c.l.b16 %v46
  %v184 = vunpack.c.l.b16 %v47
  %v185 = vunpack.c.l.b16 %v48
  %v186 = vunpack.c.l.b16 %v49
  %v187 = vunpack.c.l.b16 %v50
  %v188 = vunpack.c.l.b16 %v51
  %v189 = vunpack.c.l.b16 %v52
  %v190 = vunpack.c.l.b16 %v53
  %v191 = vunpack.c.l.b16 %v54
  %v192 = vunpack.c.l.b16 %v55
  %v193 = vunpack.c.l.b16 %v56
  %v194 = vunpack.c.l.b16 %v57
  %v195 = vunpack.c.l.b16 %v58
  %v196 = vunpack.c.l.b16 %v59
  %v197 = vunpack.c.l.b16 %v60
  %v198 = vunpack.c.l.b16 %v61
  %v199 = vunpack.c.l.b16 %v62
  %v200 = vunpack.c.l.b16 %v63
  %v201 = vunpack.c.l.b16 %v64
  %v202 = vunpack.c.l.b16 %v65
  %v203 = vunpack.c.l.b16 %v66
  %v204 = vunpack.c.l.b16 %v67
  %v205 = vunpack.c.l.b16 %v68
  %v206 = vunpack.c.l.b16 %v69
  %v207 = vunpack.c.l.b16 %v70
  %v208 = vunpack.c.l.b16 %v71
  %v209 = vunpack.c.l.b16 %v72
  %v210 = vunpack.c.l.b16 %v73
  %v211 = vunpack.c.l.b16 %v74
  %v212 = vunpack.c.l.b16 %v75
  %v213 = vunpack.c.l.b16 %v76
  %v214 = vunpack.c.l.b16 %v77
  %v215 = vunpack.c.l.b16 %v78
  %v216 = vunpack.c.l.b16 %v79
  %v217 = vunpack.c.l.b16 %v80
  %v218 = vpack.c.b16 %v155, %v154
  %v219 = vpack.c.b16 %v157, %v156
  %v220 = vpack.c.b16 %v159, %v158
  %v221 = vpack.c.b16 %v161, %v160
  %v222 = vpack.c.b16 %v163, %v162
  %v223 = vpack.c.b16 %v165, %v164
  %v224 = vpack.c.b16 %v167, %v166
  %v225 = vpack.c.b16 %v169, %v168
  %v226 = vpack.c.b16 %v171, %v170
  %v227 = vpack.c.b16 %v173, %v172
  %v228 = vpack.c.b16 %v175, %v174
  %v229 = vpack.c.b16 %v177, %v176
  %v230 = vpack.c.b16 %v179, %v178
  %v231 = vpack.c.b16 %v181, %v180
  %v232 = vpack.c.b16 %v183, %v182
  %v233 = vpack.c.b16 %v185, %v184
  %v234 = vpack.c.b16 %v187, %v186
  %v235 = vpack.c.b16 %v189, %v188
  %v236 = vpack.c.b16 %v191, %v190
  %v237 = vpack.c.b16 %v193, %v192
  %v238 = vpack.c.b16 %v195, %v194
  %v239 = vpack.c.b16 %v197, %v196
  %v240 = vpack.c.b16 %v199, %v198
  %v241 = vpack.c.b16 %v201, %v200
  %v242 = vpack.c.b16 %v203, %v202
  %v243 = vpack.c.b16 %v205, %v204
  %v244 = vpack.c.b16 %v207, %v206
  %v245 = vpack.c.b16 %v209, %v208
  %v246 = vpack.c.b16 %v211, %v210
  %v247 = vpack.c.b16 %v213, %v212
  %v248 = vpack.c.b16 %v215, %v214
  %v249 = vpack.c.b16 %v217, %v216
  %v255 = vunpack.c.l.b16 %v81
  %v256 = vunpack.c.l.b16 %v82
  %v257 = vunpack.c.l.b16 %v83
  %v258 = vunpack.c.l.b16 %v84
  %v259 = vunpack.c.l.b16 %v85
  %v260 = vpack.c.b16 %v256, %v255
  %v261 = vpack.c.b16 %v258, %v257
  %v262 = vpack.c.b16 %v259, %v259
  %vm265 = vcmask 293888
  %v267 = vsel %vm265, %v218, 0
  %v270 = vsel %vm265, %v219, 0
  %v273 = vsel %vm265, %v220, 0
  %v276 = vsel %vm265, %v221, 0
  %v279 = vsel %vm265, %v222, 0
  %v282 = vsel %vm265, %v223, 0
  %v285 = vsel %vm265, %v224, 0
  %v288 = vsel %vm265, %v225, 0
  %v291 = vsel %vm265, %v226, 0
  %v294 = vsel %vm265, %v227, 0
  %v297 = vsel %vm265, %v228, 0
  %v300 = vsel %vm265, %v229, 0
  %v303 = vsel %vm265, %v230, 0
  %v306 = vsel %vm265, %v231, 0
  %v309 = vsel %vm265, %v232, 0
  %v312 = vsel %vm265, %v233, 0
  %v315 = vsel %vm265, %v234, 0
  %v318 = vsel %vm265, %v235, 0
  %v321 = vsel %vm265, %v236, 0
  %v324 = vsel %vm265, %v237, 0
  %v327 = vsel %vm265, %v238, 0
  %v330 = vsel %vm265, %v239, 0
  %v333 = vsel %vm265, %v240, 0
  %v336 = vsel %vm265, %v241, 0
  %v339 = vsel %vm265, %v242, 0
  %v342 = vsel %vm265, %v243, 0
  %v345 = vsel %vm265, %v244, 0
  %v348 = vsel %vm265, %v245, 0
  %v351 = vsel %vm265, %v246, 0
  %v354 = vsel %vm265, %v247, 0
  %v357 = vsel %vm265, %v248, 0
  %v360 = vsel %vm265, %v249, 0
  %vm362 = vcmask 1041408
  %v364 = vsel %vm362, %v262, 0
  %366 = vmatpush.bf16.msra.mxu0 0
  %367 = vmatpush.bf16.msra.mxu0 0
  %368 = vmatpush.bf16.msra.mxu0 0
  %369 = vmatpush.bf16.msra.mxu0 0
  %370 = vmatpush.bf16.msra.mxu0 0
  %371 = vmatpush.bf16.msra.mxu0 %v364
  %372 = vmatpush.bf16.msra.mxu0 %v261
  %373 = vmatpush.bf16.msra.mxu0 %v260
  %374 = vmatmul.bf16.gmra.mxu0 %v267
  %v375 = vpop.f32.mrf.mxu0
  %v376 = vadd.f32 %v88, %v375
  %v377 = vpop.f32.mrf.mxu0
  %v378 = vadd.f32 %v88, %v377
  %379 = vmatmul.bf16.gmra.mxu0 %v270
  %v380 = vpop.f32.mrf.mxu0
  %v381 = vadd.f32 %v88, %v380
  %v382 = vpop.f32.mrf.mxu0
  %v383 = vadd.f32 %v88, %v382
  %384 = vmatmul.bf16.gmra.mxu0 %v273
  %v385 = vpop.f32.mrf.mxu0
  %v386 = vadd.f32 %v88, %v385
  %v387 = vpop.f32.mrf.mxu0
  %v388 = vadd.f32 %v88, %v387
  %389 = vmatmul.bf16.gmra.mxu0 %v276
  %v390 = vpop.f32.mrf.mxu0
  %v391 = vadd.f32 %v88, %v390
  %v392 = vpop.f32.mrf.mxu0
  %v393 = vadd.f32 %v88, %v392
  %394 = vmatmul.bf16.gmra.mxu0 %v279
  %v395 = vpop.f32.mrf.mxu0
  %v396 = vadd.f32 %v88, %v395
  %v397 = vpop.f32.mrf.mxu0
  %v398 = vadd.f32 %v88, %v397
  %399 = vmatmul.bf16.gmra.mxu0 %v282
  %v400 = vpop.f32.mrf.mxu0
  %v401 = vadd.f32 %v88, %v400
  %v402 = vpop.f32.mrf.mxu0
  %v403 = vadd.f32 %v88, %v402
  %404 = vmatmul.bf16.gmra.mxu0 %v285
  %v405 = vpop.f32.mrf.mxu0
  %v406 = vadd.f32 %v88, %v405
  %v407 = vpop.f32.mrf.mxu0
  %v408 = vadd.f32 %v88, %v407
  %409 = vmatmul.bf16.gmra.mxu0 %v288
  %v410 = vpop.f32.mrf.mxu0
  %v411 = vadd.f32 %v88, %v410
  %v412 = vpop.f32.mrf.mxu0
  %v413 = vadd.f32 %v88, %v412
  %414 = vmatmul.bf16.gmra.mxu0 %v291
  %v415 = vpop.f32.mrf.mxu0
  %v416 = vadd.f32 %v88, %v415
  %v417 = vpop.f32.mrf.mxu0
  %v418 = vadd.f32 %v88, %v417
  %419 = vmatmul.bf16.gmra.mxu0 %v294
  %v420 = vpop.f32.mrf.mxu0
  %v421 = vadd.f32 %v88, %v420
  %v422 = vpop.f32.mrf.mxu0
  %v423 = vadd.f32 %v88, %v422
  %424 = vmatmul.bf16.gmra.mxu0 %v297
  %v425 = vpop.f32.mrf.mxu0
  %v426 = vadd.f32 %v88, %v425
  %v427 = vpop.f32.mrf.mxu0
  %v428 = vadd.f32 %v88, %v427
  %429 = vmatmul.bf16.gmra.mxu0 %v300
  %v430 = vpop.f32.mrf.mxu0
  %v431 = vadd.f32 %v88, %v430
  %v432 = vpop.f32.mrf.mxu0
  %v433 = vadd.f32 %v88, %v432
  %434 = vmatmul.bf16.gmra.mxu0 %v303
  %v435 = vpop.f32.mrf.mxu0
  %v436 = vadd.f32 %v88, %v435
  %v437 = vpop.f32.mrf.mxu0
  %v438 = vadd.f32 %v88, %v437
  %439 = vmatmul.bf16.gmra.mxu0 %v306
  %v440 = vpop.f32.mrf.mxu0
  %v441 = vadd.f32 %v88, %v440
  %v442 = vpop.f32.mrf.mxu0
  %v443 = vadd.f32 %v88, %v442
  %444 = vmatmul.bf16.gmra.mxu0 %v309
  %v445 = vpop.f32.mrf.mxu0
  %v446 = vadd.f32 %v88, %v445
  %v447 = vpop.f32.mrf.mxu0
  %v448 = vadd.f32 %v88, %v447
  %449 = vmatmul.bf16.gmra.mxu0 %v312
  %v450 = vpop.f32.mrf.mxu0
  %v451 = vadd.f32 %v88, %v450
  %v452 = vpop.f32.mrf.mxu0
  %v453 = vadd.f32 %v88, %v452
  %454 = vmatmul.bf16.gmra.mxu0 %v315
  %v455 = vpop.f32.mrf.mxu0
  %v456 = vadd.f32 %v88, %v455
  %v457 = vpop.f32.mrf.mxu0
  %v458 = vadd.f32 %v88, %v457
  %459 = vmatmul.bf16.gmra.mxu0 %v318
  %v460 = vpop.f32.mrf.mxu0
  %v461 = vadd.f32 %v88, %v460
  %v462 = vpop.f32.mrf.mxu0
  %v463 = vadd.f32 %v88, %v462
  %464 = vmatmul.bf16.gmra.mxu0 %v321
  %v465 = vpop.f32.mrf.mxu0
  %v466 = vadd.f32 %v88, %v465
  %v467 = vpop.f32.mrf.mxu0
  %v468 = vadd.f32 %v88, %v467
  %469 = vmatmul.bf16.gmra.mxu0 %v324
  %v470 = vpop.f32.mrf.mxu0
  %v471 = vadd.f32 %v88, %v470
  %v472 = vpop.f32.mrf.mxu0
  %v473 = vadd.f32 %v88, %v472
  %474 = vmatmul.bf16.gmra.mxu0 %v327
  %v475 = vpop.f32.mrf.mxu0
  %v476 = vadd.f32 %v88, %v475
  %v477 = vpop.f32.mrf.mxu0
  %v478 = vadd.f32 %v88, %v477
  %479 = vmatmul.bf16.gmra.mxu0 %v330
  %v480 = vpop.f32.mrf.mxu0
  %v481 = vadd.f32 %v88, %v480
  %v482 = vpop.f32.mrf.mxu0
  %v483 = vadd.f32 %v88, %v482
  %484 = vmatmul.bf16.gmra.mxu0 %v333
  %v485 = vpop.f32.mrf.mxu0
  %v486 = vadd.f32 %v88, %v485
  %v487 = vpop.f32.mrf.mxu0
  %v488 = vadd.f32 %v88, %v487
  %489 = vmatmul.bf16.gmra.mxu0 %v336
  %v490 = vpop.f32.mrf.mxu0
  %v491 = vadd.f32 %v88, %v490
  %v492 = vpop.f32.mrf.mxu0
  %v493 = vadd.f32 %v88, %v492
  %494 = vmatmul.bf16.gmra.mxu0 %v339
  %v495 = vpop.f32.mrf.mxu0
  %v496 = vadd.f32 %v88, %v495
  %v497 = vpop.f32.mrf.mxu0
  %v498 = vadd.f32 %v88, %v497
  %499 = vmatmul.bf16.gmra.mxu0 %v342
  %v500 = vpop.f32.mrf.mxu0
  %v501 = vadd.f32 %v88, %v500
  %v502 = vpop.f32.mrf.mxu0
  %v503 = vadd.f32 %v88, %v502
  %504 = vmatmul.bf16.gmra.mxu0 %v345
  %v505 = vpop.f32.mrf.mxu0
  %v506 = vadd.f32 %v88, %v505
  %v507 = vpop.f32.mrf.mxu0
  %v508 = vadd.f32 %v88, %v507
  %509 = vmatmul.bf16.gmra.mxu0 %v348
  %v510 = vpop.f32.mrf.mxu0
  %v511 = vadd.f32 %v88, %v510
  %v512 = vpop.f32.mrf.mxu0
  %v513 = vadd.f32 %v88, %v512
  %514 = vmatmul.bf16.gmra.mxu0 %v351
  %v515 = vpop.f32.mrf.mxu0
  %v516 = vadd.f32 %v88, %v515
  %v517 = vpop.f32.mrf.mxu0
  %v518 = vadd.f32 %v88, %v517
  %519 = vmatmul.bf16.gmra.mxu0 %v354
  %v520 = vpop.f32.mrf.mxu0
  %v521 = vadd.f32 %v88, %v520
  %v522 = vpop.f32.mrf.mxu0
  %v523 = vadd.f32 %v88, %v522
  %524 = vmatmul.bf16.gmra.mxu0 %v357
  %v525 = vpop.f32.mrf.mxu0
  %v526 = vadd.f32 %v88, %v525
  %v527 = vpop.f32.mrf.mxu0
  %v528 = vadd.f32 %v88, %v527
  %529 = vmatmul.bf16.gmra.mxu0 %v360
  %v530 = vpop.f32.mrf.mxu0
  %v531 = vadd.f32 %v88, %v530
  %v532 = vpop.f32.mrf.mxu0
  %v533 = vadd.f32 %v88, %v532
  %534 = vdwg.mxu0
  %v535 = vadd.f32 %v376, %v378
  %v536 = vadd.f32 %v535, %v381
  %v537 = vadd.f32 %v536, %v383
  %v538 = vadd.f32 %v537, %v386
  %v539 = vadd.f32 %v538, %v388
  %v540 = vadd.f32 %v539, %v391
  %v541 = vadd.f32 %v540, %v393
  %v542 = vrot.slane %v541, 4
  %v543 = vadd.f32 %v541, %v542
  %v544 = vrot.slane %v543, 2
  %v545 = vadd.f32 %v543, %v544
  %v546 = vrot.slane %v545, 1
  %v547 = vadd.f32 %v545, %v546
  %v548 = vadd.f32 %v396, %v398
  %v549 = vadd.f32 %v548, %v401
  %v550 = vadd.f32 %v549, %v403
  %v551 = vadd.f32 %v550, %v406
  %v552 = vadd.f32 %v551, %v408
  %v553 = vadd.f32 %v552, %v411
  %v554 = vadd.f32 %v553, %v413
  %v555 = vrot.slane %v554, 4
  %v556 = vadd.f32 %v554, %v555
  %v557 = vrot.slane %v556, 2
  %v558 = vadd.f32 %v556, %v557
  %v559 = vrot.slane %v558, 1
  %v560 = vadd.f32 %v558, %v559
  %v561 = vadd.f32 %v416, %v418
  %v562 = vadd.f32 %v561, %v421
  %v563 = vadd.f32 %v562, %v423
  %v564 = vadd.f32 %v563, %v426
  %v565 = vadd.f32 %v564, %v428
  %v566 = vadd.f32 %v565, %v431
  %v567 = vadd.f32 %v566, %v433
  %v568 = vrot.slane %v567, 4
  %v569 = vadd.f32 %v567, %v568
  %v570 = vrot.slane %v569, 2
  %v571 = vadd.f32 %v569, %v570
  %v572 = vrot.slane %v571, 1
  %v573 = vadd.f32 %v571, %v572
  %v574 = vadd.f32 %v436, %v438
  %v575 = vadd.f32 %v574, %v441
  %v576 = vadd.f32 %v575, %v443
  %v577 = vadd.f32 %v576, %v446
  %v578 = vadd.f32 %v577, %v448
  %v579 = vadd.f32 %v578, %v451
  %v580 = vadd.f32 %v579, %v453
  %v581 = vrot.slane %v580, 4
  %v582 = vadd.f32 %v580, %v581
  %v583 = vrot.slane %v582, 2
  %v584 = vadd.f32 %v582, %v583
  %v585 = vrot.slane %v584, 1
  %v586 = vadd.f32 %v584, %v585
  %v587 = vadd.f32 %v456, %v458
  %v588 = vadd.f32 %v587, %v461
  %v589 = vadd.f32 %v588, %v463
  %v590 = vadd.f32 %v589, %v466
  %v591 = vadd.f32 %v590, %v468
  %v592 = vadd.f32 %v591, %v471
  %v593 = vadd.f32 %v592, %v473
  %v594 = vrot.slane %v593, 4
  %v595 = vadd.f32 %v593, %v594
  %v596 = vrot.slane %v595, 2
  %v597 = vadd.f32 %v595, %v596
  %v598 = vrot.slane %v597, 1
  %v599 = vadd.f32 %v597, %v598
  %v600 = vadd.f32 %v476, %v478
  %v601 = vadd.f32 %v600, %v481
  %v602 = vadd.f32 %v601, %v483
  %v603 = vadd.f32 %v602, %v486
  %v604 = vadd.f32 %v603, %v488
  %v605 = vadd.f32 %v604, %v491
  %v606 = vadd.f32 %v605, %v493
  %v607 = vrot.slane %v606, 4
  %v608 = vadd.f32 %v606, %v607
  %v609 = vrot.slane %v608, 2
  %v610 = vadd.f32 %v608, %v609
  %v611 = vrot.slane %v610, 1
  %v612 = vadd.f32 %v610, %v611
  %v613 = vadd.f32 %v496, %v498
  %v614 = vadd.f32 %v613, %v501
  %v615 = vadd.f32 %v614, %v503
  %v616 = vadd.f32 %v615, %v506
  %v617 = vadd.f32 %v616, %v508
  %v618 = vadd.f32 %v617, %v511
  %v619 = vadd.f32 %v618, %v513
  %v620 = vrot.slane %v619, 4
  %v621 = vadd.f32 %v619, %v620
  %v622 = vrot.slane %v621, 2
  %v623 = vadd.f32 %v621, %v622
  %v624 = vrot.slane %v623, 1
  %v625 = vadd.f32 %v623, %v624
  %v626 = vadd.f32 %v516, %v518
  %v627 = vadd.f32 %v626, %v521
  %v628 = vadd.f32 %v627, %v523
  %v629 = vadd.f32 %v628, %v526
  %v630 = vadd.f32 %v629, %v528
  %v631 = vadd.f32 %v630, %v531
  %v632 = vadd.f32 %v631, %v533
  %v633 = vrot.slane %v632, 4
  %v634 = vadd.f32 %v632, %v633
  %v635 = vrot.slane %v634, 2
  %v636 = vadd.f32 %v634, %v635
  %v637 = vrot.slane %v636, 1
  %v638 = vadd.f32 %v636, %v637
  %vm647 = vcmask 1041409
  %v648 = vsel %vm647, %v560, %v547
  %vm649 = vcmask 1042434
  %v650 = vsel %vm649, %v573, %v648
  %vm651 = vcmask 1043459
  %v652 = vsel %vm651, %v586, %v650
  %vm653 = vcmask 1044484
  %v654 = vsel %vm653, %v599, %v652
  %vm655 = vcmask 1045509
  %v656 = vsel %vm655, %v612, %v654
  %vm657 = vcmask 1046534
  %v658 = vsel %vm657, %v625, %v656
  %vm659 = vcmask 1047559
  %v660 = vsel %vm659, %v638, %v658
  %662 = vst [vmem:[%s3] sm:$0xff] %v660
  %v663 = vmul.f32 %v376, %v376
  %v664 = vmul.f32 %v378, %v378
  %v665 = vmul.f32 %v381, %v381
  %v666 = vmul.f32 %v383, %v383
  %v667 = vmul.f32 %v386, %v386
  %v668 = vmul.f32 %v388, %v388
  %v669 = vmul.f32 %v391, %v391
  %v670 = vmul.f32 %v393, %v393
  %v671 = vmul.f32 %v396, %v396
  %v672 = vmul.f32 %v398, %v398
  %v673 = vmul.f32 %v401, %v401
  %v674 = vmul.f32 %v403, %v403
  %v675 = vmul.f32 %v406, %v406
  %v676 = vmul.f32 %v408, %v408
  %v677 = vmul.f32 %v411, %v411
  %v678 = vmul.f32 %v413, %v413
  %v679 = vmul.f32 %v416, %v416
  %v680 = vmul.f32 %v418, %v418
  %v681 = vmul.f32 %v421, %v421
  %v682 = vmul.f32 %v423, %v423
  %v683 = vmul.f32 %v426, %v426
  %v684 = vmul.f32 %v428, %v428
  %v685 = vmul.f32 %v431, %v431
  %v686 = vmul.f32 %v433, %v433
  %v687 = vmul.f32 %v436, %v436
  %v688 = vmul.f32 %v438, %v438
  %v689 = vmul.f32 %v441, %v441
  %v690 = vmul.f32 %v443, %v443
  %v691 = vmul.f32 %v446, %v446
  %v692 = vmul.f32 %v448, %v448
  %v693 = vmul.f32 %v451, %v451
  %v694 = vmul.f32 %v453, %v453
  %v695 = vmul.f32 %v456, %v456
  %v696 = vmul.f32 %v458, %v458
  %v697 = vmul.f32 %v461, %v461
  %v698 = vmul.f32 %v463, %v463
  %v699 = vmul.f32 %v466, %v466
  %v700 = vmul.f32 %v468, %v468
  %v701 = vmul.f32 %v471, %v471
  %v702 = vmul.f32 %v473, %v473
  %v703 = vmul.f32 %v476, %v476
  %v704 = vmul.f32 %v478, %v478
  %v705 = vmul.f32 %v481, %v481
  %v706 = vmul.f32 %v483, %v483
  %v707 = vmul.f32 %v486, %v486
  %v708 = vmul.f32 %v488, %v488
  %v709 = vmul.f32 %v491, %v491
  %v710 = vmul.f32 %v493, %v493
  %v711 = vmul.f32 %v496, %v496
  %v712 = vmul.f32 %v498, %v498
  %v713 = vmul.f32 %v501, %v501
  %v714 = vmul.f32 %v503, %v503
  %v715 = vmul.f32 %v506, %v506
  %v716 = vmul.f32 %v508, %v508
  %v717 = vmul.f32 %v511, %v511
  %v718 = vmul.f32 %v513, %v513
  %v719 = vmul.f32 %v516, %v516
  %v720 = vmul.f32 %v518, %v518
  %v721 = vmul.f32 %v521, %v521
  %v722 = vmul.f32 %v523, %v523
  %v723 = vmul.f32 %v526, %v526
  %v724 = vmul.f32 %v528, %v528
  %v725 = vmul.f32 %v531, %v531
  %v726 = vmul.f32 %v533, %v533
  %v727 = vadd.f32 %v663, %v664
  %v728 = vadd.f32 %v727, %v665
  %v729 = vadd.f32 %v728, %v666
  %v730 = vadd.f32 %v729, %v667
  %v731 = vadd.f32 %v730, %v668
  %v732 = vadd.f32 %v731, %v669
  %v733 = vadd.f32 %v732, %v670
  %v734 = vrot.slane %v733, 4
  %v735 = vadd.f32 %v733, %v734
  %v736 = vrot.slane %v735, 2
  %v737 = vadd.f32 %v735, %v736
  %v738 = vrot.slane %v737, 1
  %v739 = vadd.f32 %v737, %v738
  %v740 = vadd.f32 %v671, %v672
  %v741 = vadd.f32 %v740, %v673
  %v742 = vadd.f32 %v741, %v674
  %v743 = vadd.f32 %v742, %v675
  %v744 = vadd.f32 %v743, %v676
  %v745 = vadd.f32 %v744, %v677
  %v746 = vadd.f32 %v745, %v678
  %v747 = vrot.slane %v746, 4
  %v748 = vadd.f32 %v746, %v747
  %v749 = vrot.slane %v748, 2
  %v750 = vadd.f32 %v748, %v749
  %v751 = vrot.slane %v750, 1
  %v752 = vadd.f32 %v750, %v751
  %v753 = vadd.f32 %v679, %v680
  %v754 = vadd.f32 %v753, %v681
  %v755 = vadd.f32 %v754, %v682
  %v756 = vadd.f32 %v755, %v683
  %v757 = vadd.f32 %v756, %v684
  %v758 = vadd.f32 %v757, %v685
  %v759 = vadd.f32 %v758, %v686
  %v760 = vrot.slane %v759, 4
  %v761 = vadd.f32 %v759, %v760
  %v762 = vrot.slane %v761, 2
  %v763 = vadd.f32 %v761, %v762
  %v764 = vrot.slane %v763, 1
  %v765 = vadd.f32 %v763, %v764
  %v766 = vadd.f32 %v687, %v688
  %v767 = vadd.f32 %v766, %v689
  %v768 = vadd.f32 %v767, %v690
  %v769 = vadd.f32 %v768, %v691
  %v770 = vadd.f32 %v769, %v692
  %v771 = vadd.f32 %v770, %v693
  %v772 = vadd.f32 %v771, %v694
  %v773 = vrot.slane %v772, 4
  %v774 = vadd.f32 %v772, %v773
  %v775 = vrot.slane %v774, 2
  %v776 = vadd.f32 %v774, %v775
  %v777 = vrot.slane %v776, 1
  %v778 = vadd.f32 %v776, %v777
  %v779 = vadd.f32 %v695, %v696
  %v780 = vadd.f32 %v779, %v697
  %v781 = vadd.f32 %v780, %v698
  %v782 = vadd.f32 %v781, %v699
  %v783 = vadd.f32 %v782, %v700
  %v784 = vadd.f32 %v783, %v701
  %v785 = vadd.f32 %v784, %v702
  %v786 = vrot.slane %v785, 4
  %v787 = vadd.f32 %v785, %v786
  %v788 = vrot.slane %v787, 2
  %v789 = vadd.f32 %v787, %v788
  %v790 = vrot.slane %v789, 1
  %v791 = vadd.f32 %v789, %v790
  %v792 = vadd.f32 %v703, %v704
  %v793 = vadd.f32 %v792, %v705
  %v794 = vadd.f32 %v793, %v706
  %v795 = vadd.f32 %v794, %v707
  %v796 = vadd.f32 %v795, %v708
  %v797 = vadd.f32 %v796, %v709
  %v798 = vadd.f32 %v797, %v710
  %v799 = vrot.slane %v798, 4
  %v800 = vadd.f32 %v798, %v799
  %v801 = vrot.slane %v800, 2
  %v802 = vadd.f32 %v800, %v801
  %v803 = vrot.slane %v802, 1
  %v804 = vadd.f32 %v802, %v803
  %v805 = vadd.f32 %v711, %v712
  %v806 = vadd.f32 %v805, %v713
  %v807 = vadd.f32 %v806, %v714
  %v808 = vadd.f32 %v807, %v715
  %v809 = vadd.f32 %v808, %v716
  %v810 = vadd.f32 %v809, %v717
  %v811 = vadd.f32 %v810, %v718
  %v812 = vrot.slane %v811, 4
  %v813 = vadd.f32 %v811, %v812
  %v814 = vrot.slane %v813, 2
  %v815 = vadd.f32 %v813, %v814
  %v816 = vrot.slane %v815, 1
  %v817 = vadd.f32 %v815, %v816
  %v818 = vadd.f32 %v719, %v720
  %v819 = vadd.f32 %v818, %v721
  %v820 = vadd.f32 %v819, %v722
  %v821 = vadd.f32 %v820, %v723
  %v822 = vadd.f32 %v821, %v724
  %v823 = vadd.f32 %v822, %v725
  %v824 = vadd.f32 %v823, %v726
  %v825 = vrot.slane %v824, 4
  %v826 = vadd.f32 %v824, %v825
  %v827 = vrot.slane %v826, 2
  %v828 = vadd.f32 %v826, %v827
  %v829 = vrot.slane %v828, 1
  %v830 = vadd.f32 %v828, %v829
  %v839 = vsel %vm647, %v752, %v739
  %v840 = vsel %vm649, %v765, %v839
  %v841 = vsel %vm651, %v778, %v840
  %v842 = vsel %vm653, %v791, %v841
  %v843 = vsel %vm655, %v804, %v842
  %v844 = vsel %vm657, %v817, %v843
  %v845 = vsel %vm659, %v830, %v844
  %847 = vst [vmem:[%s4] sm:$0xff] %v845
  // Predicated region
  $region14: #{conv_block_forward.2} parent=0 // pred_check
    _
  $region15: #{conv_block_forward.2} parent=0 // pred_check_branch
    %849 = sbr.rel (0) target = $region17
  $region16: #{conv_block_forward.2} parent=0 // pred_region
    _
  $region17: #{conv_block_forward.2} parent=0 // pred_fallthru
    _
  // Predicated region
  $region18: #{conv_block_forward.2} parent=0 // pred_check
    _
  $region19: #{conv_block_forward.2} parent=0 // pred_check_branch
    %851 = sbr.rel (0) target = $region21
  $region20: #{conv_block_forward.2} parent=0 // pred_region
    _
  $region21: #{conv_block_forward.2} parent=0 // pred_fallthru
    _
  // Predicated region
  $region22: #{conv_block_forward.2} parent=0 // pred_check
    _
  $region23: #{conv_block_forward.2} parent=0 // pred_check_branch
    %853 = sbr.rel (0) target = $region25
  $region24: #{conv_block_forward.2} parent=0 // pred_region
    _
  $region25: #{conv_block_forward.2} parent=0 // pred_fallthru
    _
  // Predicated region
  $region26: #{conv_block_forward.2} parent=0 // pred_check
    _
  $region27: #{conv_block_forward.2} parent=0 // pred_check_branch
    %855 = sbr.rel (0) target = $region29
  $region28: #{conv_block_forward.2} parent=0 // pred_region
    _
  $region29: #{conv_block_forward.2} parent=0 // pred_fallthru
    _

// kernel: conv_block_forward.3
$region0: #{conv_block_forward.3}
  #allocation0 [shape = 'u32[]', space=smem, size = 0x4, offset = 0x4, fixed_abs, tag = 'smem constant byte address 0x4 - core index']
  #allocation1 [shape = 'u32[72,128]{1,0:T(1,128)}', space=vmem, size = 0x9000, scoped, tag = 'internal scratch']
  %s0 = inlined_call_operand.vmem [shape: bf16[512,36], index: 0, kind: input, shape index: {}]
  %s1 = inlined_call_operand.vmem [shape: bf16[36,128], index: 1, kind: input, shape index: {}]
  %s2 = inlined_call_operand.vmem [shape: f32[1,128], index: 2, kind: input, shape index: {}]
  %s3 = inlined_call_operand.vmem [shape: f32[1,128], index: 3, kind: input, shape index: {}]
  %s4 = inlined_call_operand.vmem [shape: f32[128,128], index: 4, kind: output, shape index: {}]
  %s5 = sld [smem:[#allocation0]]
  $region26: #{conv_block_forward.3} parent=0
    _
  %s7 = ssub.s32 1, %s5
  %s8 = scalar_select 0, %s7, %s5
  // Predicated region
  $region2: #{conv_block_forward.3} parent=0 // pred_check
    _
  $region3: #{conv_block_forward.3} parent=0 // pred_check_branch
    %10 = sbr.rel (0) target = $region5
  $region4: #{conv_block_forward.3} parent=0 // pred_region
    _
  $region5: #{conv_block_forward.3} parent=0 // pred_fallthru
    _
  // Predicated region
  $region6: #{conv_block_forward.3} parent=0 // pred_check
    _
  $region7: #{conv_block_forward.3} parent=0 // pred_check_branch
    %12 = sbr.rel (0) target = $region9
  $region8: #{conv_block_forward.3} parent=0 // pred_region
    _
  $region9: #{conv_block_forward.3} parent=0 // pred_fallthru
    _
  // Predicated region
  $region10: #{conv_block_forward.3} parent=0 // pred_check
    _
  $region11: #{conv_block_forward.3} parent=0 // pred_check_branch
    %14 = sbr.rel (0) target = $region13
  $region12: #{conv_block_forward.3} parent=0 // pred_region
    _
  $region13: #{conv_block_forward.3} parent=0 // pred_fallthru
    _
  // Predicated region
  $region14: #{conv_block_forward.3} parent=0 // pred_check
    _
  $region15: #{conv_block_forward.3} parent=0 // pred_check_branch
    %16 = sbr.rel (0) target = $region17
  $region16: #{conv_block_forward.3} parent=0 // pred_region
    _
  $region17: #{conv_block_forward.3} parent=0 // pred_fallthru
    _
  %v18 = vld [vmem:[%s0] sm:$0xf]
  %v19 = vld [vmem:[%s0 + $0x4] sm:$0xf]
  %v20 = vld [vmem:[%s0 + $0x8] sm:$0xf]
  %v21 = vld [vmem:[%s0 + $0xc] sm:$0xf]
  %v22 = vld [vmem:[%s0 + $0x10] sm:$0xf]
  %v23 = vld [vmem:[%s0 + $0x14] sm:$0xf]
  %v24 = vld [vmem:[%s0 + $0x18] sm:$0xf]
  %v25 = vld [vmem:[%s0 + $0x1c] sm:$0xf]
  %v26 = vld [vmem:[%s0 + $0x20] sm:$0xf]
  %v27 = vld [vmem:[%s0 + $0x24] sm:$0xf]
  %v28 = vld [vmem:[%s0 + $0x28] sm:$0xf]
  %v29 = vld [vmem:[%s0 + $0x2c] sm:$0xf]
  %v30 = vld [vmem:[%s0 + $0x30] sm:$0xf]
  %v31 = vld [vmem:[%s0 + $0x34] sm:$0xf]
  %v32 = vld [vmem:[%s0 + $0x38] sm:$0xf]
  %v33 = vld [vmem:[%s0 + $0x3c] sm:$0xf]
  %v34 = vld [vmem:[%s0 + $0x40] sm:$0xf]
  %v35 = vld [vmem:[%s0 + $0x44] sm:$0xf]
  %v36 = vld [vmem:[%s0 + $0x48] sm:$0xf]
  %v37 = vld [vmem:[%s0 + $0x4c] sm:$0xf]
  %v38 = vld [vmem:[%s0 + $0x50] sm:$0xf]
  %v39 = vld [vmem:[%s0 + $0x54] sm:$0xf]
  %v40 = vld [vmem:[%s0 + $0x58] sm:$0xf]
  %v41 = vld [vmem:[%s0 + $0x5c] sm:$0xf]
  %v42 = vld [vmem:[%s0 + $0x60] sm:$0xf]
  %v43 = vld [vmem:[%s0 + $0x64] sm:$0xf]
  %v44 = vld [vmem:[%s0 + $0x68] sm:$0xf]
  %v45 = vld [vmem:[%s0 + $0x6c] sm:$0xf]
  %v46 = vld [vmem:[%s0 + $0x70] sm:$0xf]
  %v47 = vld [vmem:[%s0 + $0x74] sm:$0xf]
  %v48 = vld [vmem:[%s0 + $0x78] sm:$0xf]
  %v49 = vld [vmem:[%s0 + $0x7c] sm:$0xf]
  %v50 = vld [vmem:[%s0 + $0x80] sm:$0xf]
  %v51 = vld [vmem:[%s0 + $0x84] sm:$0xf]
  %v52 = vld [vmem:[%s0 + $0x88] sm:$0xf]
  %v53 = vld [vmem:[%s0 + $0x8c] sm:$0xf]
  %v54 = vld [vmem:[%s0 + $0x90] sm:$0xf]
  %v55 = vld [vmem:[%s0 + $0x94] sm:$0xf]
  %v56 = vld [vmem:[%s0 + $0x98] sm:$0xf]
  %v57 = vld [vmem:[%s0 + $0x9c] sm:$0xf]
  %v58 = vld [vmem:[%s0 + $0xa0] sm:$0xf]
  %v59 = vld [vmem:[%s0 + $0xa4] sm:$0xf]
  %v60 = vld [vmem:[%s0 + $0xa8] sm:$0xf]
  %v61 = vld [vmem:[%s0 + $0xac] sm:$0xf]
  %v62 = vld [vmem:[%s0 + $0xb0] sm:$0xf]
  %v63 = vld [vmem:[%s0 + $0xb4] sm:$0xf]
  %v64 = vld [vmem:[%s0 + $0xb8] sm:$0xf]
  %v65 = vld [vmem:[%s0 + $0xbc] sm:$0xf]
  %v66 = vld [vmem:[%s0 + $0xc0] sm:$0xf]
  %v67 = vld [vmem:[%s0 + $0xc4] sm:$0xf]
  %v68 = vld [vmem:[%s0 + $0xc8] sm:$0xf]
  %v69 = vld [vmem:[%s0 + $0xcc] sm:$0xf]
  %v70 = vld [vmem:[%s0 + $0xd0] sm:$0xf]
  %v71 = vld [vmem:[%s0 + $0xd4] sm:$0xf]
  %v72 = vld [vmem:[%s0 + $0xd8] sm:$0xf]
  %v73 = vld [vmem:[%s0 + $0xdc] sm:$0xf]
  %v74 = vld [vmem:[%s0 + $0xe0] sm:$0xf]
  %v75 = vld [vmem:[%s0 + $0xe4] sm:$0xf]
  %v76 = vld [vmem:[%s0 + $0xe8] sm:$0xf]
  %v77 = vld [vmem:[%s0 + $0xec] sm:$0xf]
  %v78 = vld [vmem:[%s0 + $0xf0] sm:$0xf]
  %v79 = vld [vmem:[%s0 + $0xf4] sm:$0xf]
  %v80 = vld [vmem:[%s0 + $0xf8] sm:$0xf]
  %v81 = vld [vmem:[%s0 + $0xfc] sm:$0xf]
  %v82 = vld [vmem:[%s1] sm:$0xf]
  %v83 = vld [vmem:[%s1 + $0x4] sm:$0xf]
  %v84 = vld [vmem:[%s1 + $0x8] sm:$0xf]
  %v85 = vld [vmem:[%s1 + $0xc] sm:$0xf]
  %v86 = vld [vmem:[%s1 + $0x10] sm:$0x3]
  %v151 = vunpack.c.l.b16 %v18
  %v152 = vunpack.c.l.b16 %v19
  %v153 = vunpack.c.l.b16 %v20
  %v154 = vunpack.c.l.b16 %v21
  %v155 = vunpack.c.l.b16 %v22
  %v156 = vunpack.c.l.b16 %v23
  %v157 = vunpack.c.l.b16 %v24
  %v158 = vunpack.c.l.b16 %v25
  %v159 = vunpack.c.l.b16 %v26
  %v160 = vunpack.c.l.b16 %v27
  %v161 = vunpack.c.l.b16 %v28
  %v162 = vunpack.c.l.b16 %v29
  %v163 = vunpack.c.l.b16 %v30
  %v164 = vunpack.c.l.b16 %v31
  %v165 = vunpack.c.l.b16 %v32
  %v166 = vunpack.c.l.b16 %v33
  %v167 = vunpack.c.l.b16 %v34
  %v168 = vunpack.c.l.b16 %v35
  %v169 = vunpack.c.l.b16 %v36
  %v170 = vunpack.c.l.b16 %v37
  %v171 = vunpack.c.l.b16 %v38
  %v172 = vunpack.c.l.b16 %v39
  %v173 = vunpack.c.l.b16 %v40
  %v174 = vunpack.c.l.b16 %v41
  %v175 = vunpack.c.l.b16 %v42
  %v176 = vunpack.c.l.b16 %v43
  %v177 = vunpack.c.l.b16 %v44
  %v178 = vunpack.c.l.b16 %v45
  %v179 = vunpack.c.l.b16 %v46
  %v180 = vunpack.c.l.b16 %v47
  %v181 = vunpack.c.l.b16 %v48
  %v182 = vunpack.c.l.b16 %v49
  %v183 = vunpack.c.l.b16 %v50
  %v184 = vunpack.c.l.b16 %v51
  %v185 = vunpack.c.l.b16 %v52
  %v186 = vunpack.c.l.b16 %v53
  %v187 = vunpack.c.l.b16 %v54
  %v188 = vunpack.c.l.b16 %v55
  %v189 = vunpack.c.l.b16 %v56
  %v190 = vunpack.c.l.b16 %v57
  %v191 = vunpack.c.l.b16 %v58
  %v192 = vunpack.c.l.b16 %v59
  %v193 = vunpack.c.l.b16 %v60
  %v194 = vunpack.c.l.b16 %v61
  %v195 = vunpack.c.l.b16 %v62
  %v196 = vunpack.c.l.b16 %v63
  %v197 = vunpack.c.l.b16 %v64
  %v198 = vunpack.c.l.b16 %v65
  %v199 = vunpack.c.l.b16 %v66
  %v200 = vunpack.c.l.b16 %v67
  %v201 = vunpack.c.l.b16 %v68
  %v202 = vunpack.c.l.b16 %v69
  %v203 = vunpack.c.l.b16 %v70
  %v204 = vunpack.c.l.b16 %v71
  %v205 = vunpack.c.l.b16 %v72
  %v206 = vunpack.c.l.b16 %v73
  %v207 = vunpack.c.l.b16 %v74
  %v208 = vunpack.c.l.b16 %v75
  %v209 = vunpack.c.l.b16 %v76
  %v210 = vunpack.c.l.b16 %v77
  %v211 = vunpack.c.l.b16 %v78
  %v212 = vunpack.c.l.b16 %v79
  %v213 = vunpack.c.l.b16 %v80
  %v214 = vunpack.c.l.b16 %v81
  %v215 = vpack.c.b16 %v152, %v151
  %v216 = vpack.c.b16 %v154, %v153
  %v217 = vpack.c.b16 %v156, %v155
  %v218 = vpack.c.b16 %v158, %v157
  %v219 = vpack.c.b16 %v160, %v159
  %v220 = vpack.c.b16 %v162, %v161
  %v221 = vpack.c.b16 %v164, %v163
  %v222 = vpack.c.b16 %v166, %v165
  %v223 = vpack.c.b16 %v168, %v167
  %v224 = vpack.c.b16 %v170, %v169
  %v225 = vpack.c.b16 %v172, %v171
  %v226 = vpack.c.b16 %v174, %v173
  %v227 = vpack.c.b16 %v176, %v175
  %v228 = vpack.c.b16 %v178, %v177
  %v229 = vpack.c.b16 %v180, %v179
  %v230 = vpack.c.b16 %v182, %v181
  %v231 = vpack.c.b16 %v184, %v183
  %v232 = vpack.c.b16 %v186, %v185
  %v233 = vpack.c.b16 %v188, %v187
  %v234 = vpack.c.b16 %v190, %v189
  %v235 = vpack.c.b16 %v192, %v191
  %v236 = vpack.c.b16 %v194, %v193
  %v237 = vpack.c.b16 %v196, %v195
  %v238 = vpack.c.b16 %v198, %v197
  %v239 = vpack.c.b16 %v200, %v199
  %v240 = vpack.c.b16 %v202, %v201
  %v241 = vpack.c.b16 %v204, %v203
  %v242 = vpack.c.b16 %v206, %v205
  %v243 = vpack.c.b16 %v208, %v207
  %v244 = vpack.c.b16 %v210, %v209
  %v245 = vpack.c.b16 %v212, %v211
  %v246 = vpack.c.b16 %v214, %v213
  %v252 = vunpack.c.l.b16 %v82
  %v253 = vunpack.c.l.b16 %v83
  %v254 = vunpack.c.l.b16 %v84
  %v255 = vunpack.c.l.b16 %v85
  %v256 = vunpack.c.l.b16 %v86
  %v257 = vpack.c.b16 %v253, %v252
  %v258 = vpack.c.b16 %v255, %v254
  %v259 = vpack.c.b16 %v256, %v256
  %vm262 = vcmask 293888
  %v264 = vsel %vm262, %v215, 0
  %v267 = vsel %vm262, %v216, 0
  %v270 = vsel %vm262, %v217, 0
  %v273 = vsel %vm262, %v218, 0
  %v276 = vsel %vm262, %v219, 0
  %v279 = vsel %vm262, %v220, 0
  %v282 = vsel %vm262, %v221, 0
  %v285 = vsel %vm262, %v222, 0
  %v288 = vsel %vm262, %v223, 0
  %v291 = vsel %vm262, %v224, 0
  %v294 = vsel %vm262, %v225, 0
  %v297 = vsel %vm262, %v226, 0
  %v300 = vsel %vm262, %v227, 0
  %v303 = vsel %vm262, %v228, 0
  %v306 = vsel %vm262, %v229, 0
  %v309 = vsel %vm262, %v230, 0
  %v312 = vsel %vm262, %v231, 0
  %v315 = vsel %vm262, %v232, 0
  %v318 = vsel %vm262, %v233, 0
  %v321 = vsel %vm262, %v234, 0
  %v324 = vsel %vm262, %v235, 0
  %v327 = vsel %vm262, %v236, 0
  %v330 = vsel %vm262, %v237, 0
  %v333 = vsel %vm262, %v238, 0
  %v336 = vsel %vm262, %v239, 0
  %v339 = vsel %vm262, %v240, 0
  %v342 = vsel %vm262, %v241, 0
  %v345 = vsel %vm262, %v242, 0
  %v348 = vsel %vm262, %v243, 0
  %v351 = vsel %vm262, %v244, 0
  %v354 = vsel %vm262, %v245, 0
  %v357 = vsel %vm262, %v246, 0
  %vm359 = vcmask 1041408
  %v361 = vsel %vm359, %v259, 0
  %363 = vmatpush.bf16.msra.mxu0 0
  %364 = vmatpush.bf16.msra.mxu0 0
  %365 = vmatpush.bf16.msra.mxu0 0
  %366 = vmatpush.bf16.msra.mxu0 0
  %367 = vmatpush.bf16.msra.mxu0 0
  %368 = vmatpush.bf16.msra.mxu0 %v361
  %369 = vmatpush.bf16.msra.mxu0 %v258
  %370 = vmatpush.bf16.msra.mxu0 %v257
  %371 = vmatmul.bf16.gmra.mxu0 %v264
  %v372 = vpop.f32.mrf.mxu0
  %v373 = vadd.f32 0.0, %v372
  %v374 = vpop.f32.mrf.mxu0
  %v375 = vadd.f32 0.0, %v374
  %376 = vmatmul.bf16.gmra.mxu0 %v267
  %v377 = vpop.f32.mrf.mxu0
  %v378 = vadd.f32 0.0, %v377
  %v379 = vpop.f32.mrf.mxu0
  %v380 = vadd.f32 0.0, %v379
  %381 = vmatmul.bf16.gmra.mxu0 %v270
  %v382 = vpop.f32.mrf.mxu0
  %v383 = vadd.f32 0.0, %v382
  %v384 = vpop.f32.mrf.mxu0
  %v385 = vadd.f32 0.0, %v384
  %386 = vmatmul.bf16.gmra.mxu0 %v273
  %v387 = vpop.f32.mrf.mxu0
  %v388 = vadd.f32 0.0, %v387
  %v389 = vpop.f32.mrf.mxu0
  %v390 = vadd.f32 0.0, %v389
  %391 = vmatmul.bf16.gmra.mxu0 %v276
  %v392 = vpop.f32.mrf.mxu0
  %v393 = vadd.f32 0.0, %v392
  %v394 = vpop.f32.mrf.mxu0
  %v395 = vadd.f32 0.0, %v394
  %396 = vmatmul.bf16.gmra.mxu0 %v279
  %v397 = vpop.f32.mrf.mxu0
  %v398 = vadd.f32 0.0, %v397
  %v399 = vpop.f32.mrf.mxu0
  %v400 = vadd.f32 0.0, %v399
  %401 = vmatmul.bf16.gmra.mxu0 %v282
  %v402 = vpop.f32.mrf.mxu0
  %v403 = vadd.f32 0.0, %v402
  %v404 = vpop.f32.mrf.mxu0
  %v405 = vadd.f32 0.0, %v404
  %406 = vmatmul.bf16.gmra.mxu0 %v285
  %v407 = vpop.f32.mrf.mxu0
  %v408 = vadd.f32 0.0, %v407
  %v409 = vpop.f32.mrf.mxu0
  %v410 = vadd.f32 0.0, %v409
  %411 = vmatmul.bf16.gmra.mxu0 %v288
  %v412 = vpop.f32.mrf.mxu0
  %v413 = vadd.f32 0.0, %v412
  %v414 = vpop.f32.mrf.mxu0
  %v415 = vadd.f32 0.0, %v414
  %416 = vmatmul.bf16.gmra.mxu0 %v291
  %v417 = vpop.f32.mrf.mxu0
  %v418 = vadd.f32 0.0, %v417
  %v419 = vpop.f32.mrf.mxu0
  %v420 = vadd.f32 0.0, %v419
  %421 = vmatmul.bf16.gmra.mxu0 %v294
  %v422 = vpop.f32.mrf.mxu0
  %v423 = vadd.f32 0.0, %v422
  %v424 = vpop.f32.mrf.mxu0
  %v425 = vadd.f32 0.0, %v424
  %426 = vmatmul.bf16.gmra.mxu0 %v297
  %v427 = vpop.f32.mrf.mxu0
  %v428 = vadd.f32 0.0, %v427
  %v429 = vpop.f32.mrf.mxu0
  %v430 = vadd.f32 0.0, %v429
  %431 = vmatmul.bf16.gmra.mxu0 %v300
  %v432 = vpop.f32.mrf.mxu0
  %v433 = vadd.f32 0.0, %v432
  %v434 = vpop.f32.mrf.mxu0
  %v435 = vadd.f32 0.0, %v434
  %436 = vmatmul.bf16.gmra.mxu0 %v303
  %v437 = vpop.f32.mrf.mxu0
  %v438 = vadd.f32 0.0, %v437
  %v439 = vpop.f32.mrf.mxu0
  %v440 = vadd.f32 0.0, %v439
  %441 = vmatmul.bf16.gmra.mxu0 %v306
  %v442 = vpop.f32.mrf.mxu0
  %v443 = vadd.f32 0.0, %v442
  %v444 = vpop.f32.mrf.mxu0
  %v445 = vadd.f32 0.0, %v444
  %446 = vmatmul.bf16.gmra.mxu0 %v309
  %v447 = vpop.f32.mrf.mxu0
  %v448 = vadd.f32 0.0, %v447
  %v449 = vpop.f32.mrf.mxu0
  %v450 = vadd.f32 0.0, %v449
  %451 = vmatmul.bf16.gmra.mxu0 %v312
  %v452 = vpop.f32.mrf.mxu0
  %v453 = vadd.f32 0.0, %v452
  %v454 = vpop.f32.mrf.mxu0
  %v455 = vadd.f32 0.0, %v454
  %456 = vmatmul.bf16.gmra.mxu0 %v315
  %v457 = vpop.f32.mrf.mxu0
  %v458 = vadd.f32 0.0, %v457
  %v459 = vpop.f32.mrf.mxu0
  %v460 = vadd.f32 0.0, %v459
  %461 = vmatmul.bf16.gmra.mxu0 %v318
  %v462 = vpop.f32.mrf.mxu0
  %v463 = vadd.f32 0.0, %v462
  %v464 = vpop.f32.mrf.mxu0
  %v465 = vadd.f32 0.0, %v464
  %466 = vmatmul.bf16.gmra.mxu0 %v321
  %v467 = vpop.f32.mrf.mxu0
  %v468 = vadd.f32 0.0, %v467
  %v469 = vpop.f32.mrf.mxu0
  %v470 = vadd.f32 0.0, %v469
  %471 = vmatmul.bf16.gmra.mxu0 %v324
  %v472 = vpop.f32.mrf.mxu0
  %v473 = vadd.f32 0.0, %v472
  %v474 = vpop.f32.mrf.mxu0
  %v475 = vadd.f32 0.0, %v474
  %476 = vmatmul.bf16.gmra.mxu0 %v327
  %v477 = vpop.f32.mrf.mxu0
  %v478 = vadd.f32 0.0, %v477
  %v479 = vpop.f32.mrf.mxu0
  %v480 = vadd.f32 0.0, %v479
  %481 = vmatmul.bf16.gmra.mxu0 %v330
  %v482 = vpop.f32.mrf.mxu0
  %v483 = vadd.f32 0.0, %v482
  %v484 = vpop.f32.mrf.mxu0
  %v485 = vadd.f32 0.0, %v484
  %486 = vmatmul.bf16.gmra.mxu0 %v333
  %v487 = vpop.f32.mrf.mxu0
  %v488 = vadd.f32 0.0, %v487
  %v489 = vpop.f32.mrf.mxu0
  %v490 = vadd.f32 0.0, %v489
  %491 = vmatmul.bf16.gmra.mxu0 %v336
  %v492 = vpop.f32.mrf.mxu0
  %v493 = vadd.f32 0.0, %v492
  %v494 = vpop.f32.mrf.mxu0
  %v495 = vadd.f32 0.0, %v494
  %496 = vmatmul.bf16.gmra.mxu0 %v339
  %v497 = vpop.f32.mrf.mxu0
  %v498 = vadd.f32 0.0, %v497
  %v499 = vpop.f32.mrf.mxu0
  %v500 = vadd.f32 0.0, %v499
  %501 = vmatmul.bf16.gmra.mxu0 %v342
  %v502 = vpop.f32.mrf.mxu0
  %v503 = vadd.f32 0.0, %v502
  %v504 = vpop.f32.mrf.mxu0
  %v505 = vadd.f32 0.0, %v504
  %506 = vmatmul.bf16.gmra.mxu0 %v345
  %v507 = vpop.f32.mrf.mxu0
  %v508 = vadd.f32 0.0, %v507
  %v509 = vpop.f32.mrf.mxu0
  %v510 = vadd.f32 0.0, %v509
  %511 = vmatmul.bf16.gmra.mxu0 %v348
  %v512 = vpop.f32.mrf.mxu0
  %v513 = vadd.f32 0.0, %v512
  %v514 = vpop.f32.mrf.mxu0
  %v515 = vadd.f32 0.0, %v514
  %516 = vmatmul.bf16.gmra.mxu0 %v351
  %v517 = vpop.f32.mrf.mxu0
  %v518 = vadd.f32 0.0, %v517
  %v519 = vpop.f32.mrf.mxu0
  %v520 = vadd.f32 0.0, %v519
  %521 = vmatmul.bf16.gmra.mxu0 %v354
  %v522 = vpop.f32.mrf.mxu0
  %v523 = vadd.f32 0.0, %v522
  %v524 = vpop.f32.mrf.mxu0
  %v525 = vadd.f32 0.0, %v524
  %526 = vmatmul.bf16.gmra.mxu0 %v357
  %v527 = vpop.f32.mrf.mxu0
  %v528 = vadd.f32 0.0, %v527
  %v529 = vpop.f32.mrf.mxu0
  %v530 = vadd.f32 0.0, %v529
  %531 = vdwg.mxu0
  %v532 = vld [vmem:[%s2] sm:$0x1]
  %v534 = vperm.slane %v532, 0
  %v536 = vmul.f32 %v373, %v534
  %v537 = vmul.f32 %v375, %v534
  %v538 = vmul.f32 %v378, %v534
  %v539 = vmul.f32 %v380, %v534
  %v540 = vmul.f32 %v383, %v534
  %v541 = vmul.f32 %v385, %v534
  %v542 = vmul.f32 %v388, %v534
  %v543 = vmul.f32 %v390, %v534
  %v544 = vmul.f32 %v393, %v534
  %v545 = vmul.f32 %v395, %v534
  %v546 = vmul.f32 %v398, %v534
  %v547 = vmul.f32 %v400, %v534
  %v548 = vmul.f32 %v403, %v534
  %v549 = vmul.f32 %v405, %v534
  %v550 = vmul.f32 %v408, %v534
  %v551 = vmul.f32 %v410, %v534
  %v552 = vmul.f32 %v413, %v534
  %v553 = vmul.f32 %v415, %v534
  %v554 = vmul.f32 %v418, %v534
  %v555 = vmul.f32 %v420, %v534
  %v556 = vmul.f32 %v423, %v534
  %v557 = vmul.f32 %v425, %v534
  %v558 = vmul.f32 %v428, %v534
  %v559 = vmul.f32 %v430, %v534
  %v560 = vmul.f32 %v433, %v534
  %v561 = vmul.f32 %v435, %v534
  %v562 = vmul.f32 %v438, %v534
  %v563 = vmul.f32 %v440, %v534
  %v564 = vmul.f32 %v443, %v534
  %v565 = vmul.f32 %v445, %v534
  %v566 = vmul.f32 %v448, %v534
  %v567 = vmul.f32 %v450, %v534
  %v568 = vmul.f32 %v453, %v534
  %v569 = vmul.f32 %v455, %v534
  %v570 = vmul.f32 %v458, %v534
  %v571 = vmul.f32 %v460, %v534
  %v572 = vmul.f32 %v463, %v534
  %v573 = vmul.f32 %v465, %v534
  %v574 = vmul.f32 %v468, %v534
  %v575 = vmul.f32 %v470, %v534
  %v576 = vmul.f32 %v473, %v534
  %v577 = vmul.f32 %v475, %v534
  %v578 = vmul.f32 %v478, %v534
  %v579 = vmul.f32 %v480, %v534
  %v580 = vmul.f32 %v483, %v534
  %v581 = vmul.f32 %v485, %v534
  %v582 = vmul.f32 %v488, %v534
  %v583 = vmul.f32 %v490, %v534
  %v584 = vmul.f32 %v493, %v534
  %v585 = vmul.f32 %v495, %v534
  %v586 = vmul.f32 %v498, %v534
  %v587 = vmul.f32 %v500, %v534
  %v588 = vmul.f32 %v503, %v534
  %v589 = vmul.f32 %v505, %v534
  %v590 = vmul.f32 %v508, %v534
  %v591 = vmul.f32 %v510, %v534
  %v592 = vmul.f32 %v513, %v534
  %v593 = vmul.f32 %v515, %v534
  %v594 = vmul.f32 %v518, %v534
  %v595 = vmul.f32 %v520, %v534
  %v596 = vmul.f32 %v523, %v534
  %v597 = vmul.f32 %v525, %v534
  %v598 = vmul.f32 %v528, %v534
  %v599 = vmul.f32 %v530, %v534
  %v600 = vld [vmem:[%s3] sm:$0x1]
  %v602 = vperm.slane %v600, 0
  %v604 = vadd.f32 %v536, %v602
  %v605 = vadd.f32 %v537, %v602
  %v606 = vadd.f32 %v538, %v602
  %v607 = vadd.f32 %v539, %v602
  %v608 = vadd.f32 %v540, %v602
  %v609 = vadd.f32 %v541, %v602
  %v610 = vadd.f32 %v542, %v602
  %v611 = vadd.f32 %v543, %v602
  %v612 = vadd.f32 %v544, %v602
  %v613 = vadd.f32 %v545, %v602
  %v614 = vadd.f32 %v546, %v602
  %v615 = vadd.f32 %v547, %v602
  %v616 = vadd.f32 %v548, %v602
  %v617 = vadd.f32 %v549, %v602
  %v618 = vadd.f32 %v550, %v602
  %v619 = vadd.f32 %v551, %v602
  %v620 = vadd.f32 %v552, %v602
  %v621 = vadd.f32 %v553, %v602
  %v622 = vadd.f32 %v554, %v602
  %v623 = vadd.f32 %v555, %v602
  %v624 = vadd.f32 %v556, %v602
  %v625 = vadd.f32 %v557, %v602
  %v626 = vadd.f32 %v558, %v602
  %v627 = vadd.f32 %v559, %v602
  %v628 = vadd.f32 %v560, %v602
  %v629 = vadd.f32 %v561, %v602
  %v630 = vadd.f32 %v562, %v602
  %v631 = vadd.f32 %v563, %v602
  %v632 = vadd.f32 %v564, %v602
  %v633 = vadd.f32 %v565, %v602
  %v634 = vadd.f32 %v566, %v602
  %v635 = vadd.f32 %v567, %v602
  %v636 = vadd.f32 %v568, %v602
  %v637 = vadd.f32 %v569, %v602
  %v638 = vadd.f32 %v570, %v602
  %v639 = vadd.f32 %v571, %v602
  %v640 = vadd.f32 %v572, %v602
  %v641 = vadd.f32 %v573, %v602
  %v642 = vadd.f32 %v574, %v602
  %v643 = vadd.f32 %v575, %v602
  %v644 = vadd.f32 %v576, %v602
  %v645 = vadd.f32 %v577, %v602
  %v646 = vadd.f32 %v578, %v602
  %v647 = vadd.f32 %v579, %v602
  %v648 = vadd.f32 %v580, %v602
  %v649 = vadd.f32 %v581, %v602
  %v650 = vadd.f32 %v582, %v602
  %v651 = vadd.f32 %v583, %v602
  %v652 = vadd.f32 %v584, %v602
  %v653 = vadd.f32 %v585, %v602
  %v654 = vadd.f32 %v586, %v602
  %v655 = vadd.f32 %v587, %v602
  %v656 = vadd.f32 %v588, %v602
  %v657 = vadd.f32 %v589, %v602
  %v658 = vadd.f32 %v590, %v602
  %v659 = vadd.f32 %v591, %v602
  %v660 = vadd.f32 %v592, %v602
  %v661 = vadd.f32 %v593, %v602
  %v662 = vadd.f32 %v594, %v602
  %v663 = vadd.f32 %v595, %v602
  %v664 = vadd.f32 %v596, %v602
  %v665 = vadd.f32 %v597, %v602
  %v666 = vadd.f32 %v598, %v602
  %v667 = vadd.f32 %v599, %v602
  %v668 = vmax.f32 %v604, 0.0
  %v669 = vmax.f32 %v605, 0.0
  %v670 = vmax.f32 %v606, 0.0
  %v671 = vmax.f32 %v607, 0.0
  %v672 = vmax.f32 %v608, 0.0
  %v673 = vmax.f32 %v609, 0.0
  %v674 = vmax.f32 %v610, 0.0
  %v675 = vmax.f32 %v611, 0.0
  %v676 = vmax.f32 %v612, 0.0
  %v677 = vmax.f32 %v613, 0.0
  %v678 = vmax.f32 %v614, 0.0
  %v679 = vmax.f32 %v615, 0.0
  %v680 = vmax.f32 %v616, 0.0
  %v681 = vmax.f32 %v617, 0.0
  %v682 = vmax.f32 %v618, 0.0
  %v683 = vmax.f32 %v619, 0.0
  %v684 = vmax.f32 %v620, 0.0
  %v685 = vmax.f32 %v621, 0.0
  %v686 = vmax.f32 %v622, 0.0
  %v687 = vmax.f32 %v623, 0.0
  %v688 = vmax.f32 %v624, 0.0
  %v689 = vmax.f32 %v625, 0.0
  %v690 = vmax.f32 %v626, 0.0
  %v691 = vmax.f32 %v627, 0.0
  %v692 = vmax.f32 %v628, 0.0
  %v693 = vmax.f32 %v629, 0.0
  %v694 = vmax.f32 %v630, 0.0
  %v695 = vmax.f32 %v631, 0.0
  %v696 = vmax.f32 %v632, 0.0
  %v697 = vmax.f32 %v633, 0.0
  %v698 = vmax.f32 %v634, 0.0
  %v699 = vmax.f32 %v635, 0.0
  %v700 = vmax.f32 %v636, 0.0
  %v701 = vmax.f32 %v637, 0.0
  %v702 = vmax.f32 %v638, 0.0
  %v703 = vmax.f32 %v639, 0.0
  %v704 = vmax.f32 %v640, 0.0
  %v705 = vmax.f32 %v641, 0.0
  %v706 = vmax.f32 %v642, 0.0
  %v707 = vmax.f32 %v643, 0.0
  %v708 = vmax.f32 %v644, 0.0
  %v709 = vmax.f32 %v645, 0.0
  %v710 = vmax.f32 %v646, 0.0
  %v711 = vmax.f32 %v647, 0.0
  %v712 = vmax.f32 %v648, 0.0
  %v713 = vmax.f32 %v649, 0.0
  %v714 = vmax.f32 %v650, 0.0
  %v715 = vmax.f32 %v651, 0.0
  %v716 = vmax.f32 %v652, 0.0
  %v717 = vmax.f32 %v653, 0.0
  %v718 = vmax.f32 %v654, 0.0
  %v719 = vmax.f32 %v655, 0.0
  %v720 = vmax.f32 %v656, 0.0
  %v721 = vmax.f32 %v657, 0.0
  %v722 = vmax.f32 %v658, 0.0
  %v723 = vmax.f32 %v659, 0.0
  %v724 = vmax.f32 %v660, 0.0
  %v725 = vmax.f32 %v661, 0.0
  %v726 = vmax.f32 %v662, 0.0
  %v727 = vmax.f32 %v663, 0.0
  %v728 = vmax.f32 %v664, 0.0
  %v729 = vmax.f32 %v665, 0.0
  %v730 = vmax.f32 %v666, 0.0
  %v731 = vmax.f32 %v667, 0.0
  %v796 = vrot.slane %v668, 2
  %v797 = vrot.slane %v668, 4
  %v798 = vrot.slane %v668, 6
  %v799 = vrot.slane %v669, 2
  %v800 = vrot.slane %v669, 4
  %v801 = vrot.slane %v669, 6
  %v802 = vrot.slane %v670, 2
  %v803 = vrot.slane %v670, 4
  %v804 = vrot.slane %v670, 6
  %v805 = vrot.slane %v671, 2
  %v806 = vrot.slane %v671, 4
  %v807 = vrot.slane %v671, 6
  %v808 = vrot.slane %v672, 2
  %v809 = vrot.slane %v672, 4
  %v810 = vrot.slane %v672, 6
  %v811 = vrot.slane %v673, 2
  %v812 = vrot.slane %v673, 4
  %v813 = vrot.slane %v673, 6
  %v814 = vrot.slane %v674, 2
  %v815 = vrot.slane %v674, 4
  %v816 = vrot.slane %v674, 6
  %v817 = vrot.slane %v675, 2
  %v818 = vrot.slane %v675, 4
  %v819 = vrot.slane %v675, 6
  %v820 = vrot.slane %v676, 2
  %v821 = vrot.slane %v676, 4
  %v822 = vrot.slane %v676, 6
  %v823 = vrot.slane %v677, 2
  %v824 = vrot.slane %v677, 4
  %v825 = vrot.slane %v677, 6
  %v826 = vrot.slane %v678, 2
  %v827 = vrot.slane %v678, 4
  %v828 = vrot.slane %v678, 6
  %v829 = vrot.slane %v679, 2
  %v830 = vrot.slane %v679, 4
  %v831 = vrot.slane %v679, 6
  %v832 = vrot.slane %v680, 2
  %v833 = vrot.slane %v680, 4
  %v834 = vrot.slane %v680, 6
  %v835 = vrot.slane %v681, 2
  %v836 = vrot.slane %v681, 4
  %v837 = vrot.slane %v681, 6
  %v838 = vrot.slane %v682, 2
  %v839 = vrot.slane %v682, 4
  %v840 = vrot.slane %v682, 6
  %v841 = vrot.slane %v683, 2
  %v842 = vrot.slane %v683, 4
  %v843 = vrot.slane %v683, 6
  %v844 = vrot.slane %v684, 2
  %v845 = vrot.slane %v684, 4
  %v846 = vrot.slane %v684, 6
  %v847 = vrot.slane %v685, 2
  %v848 = vrot.slane %v685, 4
  %v849 = vrot.slane %v685, 6
  %v850 = vrot.slane %v686, 2
  %v851 = vrot.slane %v686, 4
  %v852 = vrot.slane %v686, 6
  %v853 = vrot.slane %v687, 2
  %v854 = vrot.slane %v687, 4
  %v855 = vrot.slane %v687, 6
  %v856 = vrot.slane %v688, 2
  %v857 = vrot.slane %v688, 4
  %v858 = vrot.slane %v688, 6
  %v859 = vrot.slane %v689, 2
  %v860 = vrot.slane %v689, 4
  %v861 = vrot.slane %v689, 6
  %v862 = vrot.slane %v690, 2
  %v863 = vrot.slane %v690, 4
  %v864 = vrot.slane %v690, 6
  %v865 = vrot.slane %v691, 2
  %v866 = vrot.slane %v691, 4
  %v867 = vrot.slane %v691, 6
  %v868 = vrot.slane %v692, 2
  %v869 = vrot.slane %v692, 4
  %v870 = vrot.slane %v692, 6
  %v871 = vrot.slane %v693, 2
  %v872 = vrot.slane %v693, 4
  %v873 = vrot.slane %v693, 6
  %v874 = vrot.slane %v694, 2
  %v875 = vrot.slane %v694, 4
  %v876 = vrot.slane %v694, 6
  %v877 = vrot.slane %v695, 2
  %v878 = vrot.slane %v695, 4
  %v879 = vrot.slane %v695, 6
  %v880 = vrot.slane %v696, 2
  %v881 = vrot.slane %v696, 4
  %v882 = vrot.slane %v696, 6
  %v883 = vrot.slane %v697, 2
  %v884 = vrot.slane %v697, 4
  %v885 = vrot.slane %v697, 6
  %v886 = vrot.slane %v698, 2
  %v887 = vrot.slane %v698, 4
  %v888 = vrot.slane %v698, 6
  %v889 = vrot.slane %v699, 2
  %v890 = vrot.slane %v699, 4
  %v891 = vrot.slane %v699, 6
  %v892 = vrot.slane %v700, 2
  %v893 = vrot.slane %v700, 4
  %v894 = vrot.slane %v700, 6
  %v895 = vrot.slane %v701, 2
  %v896 = vrot.slane %v701, 4
  %v897 = vrot.slane %v701, 6
  %v898 = vrot.slane %v702, 2
  %v899 = vrot.slane %v702, 4
  %v900 = vrot.slane %v702, 6
  %v901 = vrot.slane %v703, 2
  %v902 = vrot.slane %v703, 4
  %v903 = vrot.slane %v703, 6
  %v904 = vrot.slane %v704, 2
  %v905 = vrot.slane %v704, 4
  %v906 = vrot.slane %v704, 6
  %v907 = vrot.slane %v705, 2
  %v908 = vrot.slane %v705, 4
  %v909 = vrot.slane %v705, 6
  %v910 = vrot.slane %v706, 2
  %v911 = vrot.slane %v706, 4
  %v912 = vrot.slane %v706, 6
  %v913 = vrot.slane %v707, 2
  %v914 = vrot.slane %v707, 4
  %v915 = vrot.slane %v707, 6
  %v916 = vrot.slane %v708, 2
  %v917 = vrot.slane %v708, 4
  %v918 = vrot.slane %v708, 6
  %v919 = vrot.slane %v709, 2
  %v920 = vrot.slane %v709, 4
  %v921 = vrot.slane %v709, 6
  %v922 = vrot.slane %v710, 2
  %v923 = vrot.slane %v710, 4
  %v924 = vrot.slane %v710, 6
  %v925 = vrot.slane %v711, 2
  %v926 = vrot.slane %v711, 4
  %v927 = vrot.slane %v711, 6
  %v928 = vrot.slane %v712, 2
  %v929 = vrot.slane %v712, 4
  %v930 = vrot.slane %v712, 6
  %v931 = vrot.slane %v713, 2
  %v932 = vrot.slane %v713, 4
  %v933 = vrot.slane %v713, 6
  %v934 = vrot.slane %v714, 2
  %v935 = vrot.slane %v714, 4
  %v936 = vrot.slane %v714, 6
  %v937 = vrot.slane %v715, 2
  %v938 = vrot.slane %v715, 4
  %v939 = vrot.slane %v715, 6
  %v940 = vrot.slane %v716, 2
  %v941 = vrot.slane %v716, 4
  %v942 = vrot.slane %v716, 6
  %v943 = vrot.slane %v717, 2
  %v944 = vrot.slane %v717, 4
  %v945 = vrot.slane %v717, 6
  %v946 = vrot.slane %v718, 2
  %v947 = vrot.slane %v718, 4
  %v948 = vrot.slane %v718, 6
  %v949 = vrot.slane %v719, 2
  %v950 = vrot.slane %v719, 4
  %v951 = vrot.slane %v719, 6
  %v952 = vrot.slane %v720, 2
  %v953 = vrot.slane %v720, 4
  %v954 = vrot.slane %v720, 6
  %v955 = vrot.slane %v721, 2
  %v956 = vrot.slane %v721, 4
  %v957 = vrot.slane %v721, 6
  %v958 = vrot.slane %v722, 2
  %v959 = vrot.slane %v722, 4
  %v960 = vrot.slane %v722, 6
  %v961 = vrot.slane %v723, 2
  %v962 = vrot.slane %v723, 4
  %v963 = vrot.slane %v723, 6
  %v964 = vrot.slane %v724, 2
  %v965 = vrot.slane %v724, 4
  %v966 = vrot.slane %v724, 6
  %v967 = vrot.slane %v725, 2
  %v968 = vrot.slane %v725, 4
  %v969 = vrot.slane %v725, 6
  %v970 = vrot.slane %v726, 2
  %v971 = vrot.slane %v726, 4
  %v972 = vrot.slane %v726, 6
  %v973 = vrot.slane %v727, 2
  %v974 = vrot.slane %v727, 4
  %v975 = vrot.slane %v727, 6
  %v976 = vrot.slane %v728, 2
  %v977 = vrot.slane %v728, 4
  %v978 = vrot.slane %v728, 6
  %v979 = vrot.slane %v729, 2
  %v980 = vrot.slane %v729, 4
  %v981 = vrot.slane %v729, 6
  %v982 = vrot.slane %v730, 2
  %v983 = vrot.slane %v730, 4
  %v984 = vrot.slane %v730, 6
  %v985 = vrot.slane %v731, 2
  %v986 = vrot.slane %v731, 4
  %v987 = vrot.slane %v731, 6
  %v1180 = vrot.slane %v668, 7
  %v1181 = vrot.slane %v1180, 2
  %v1182 = vrot.slane %v796, 7
  %v1183 = vrot.slane %v1182, 2
  %v1184 = vrot.slane %v797, 7
  %v1185 = vrot.slane %v1184, 2
  %v1186 = vrot.slane %v798, 7
  %v1187 = vrot.slane %v1186, 2
  %v1188 = vrot.slane %v669, 7
  %v1189 = vrot.slane %v1188, 2
  %v1190 = vrot.slane %v799, 7
  %v1191 = vrot.slane %v1190, 2
  %v1192 = vrot.slane %v800, 7
  %v1193 = vrot.slane %v1192, 2
  %v1194 = vrot.slane %v801, 7
  %v1195 = vrot.slane %v1194, 2
  %v1196 = vrot.slane %v670, 7
  %v1197 = vrot.slane %v1196, 2
  %v1198 = vrot.slane %v802, 7
  %v1199 = vrot.slane %v1198, 2
  %v1200 = vrot.slane %v803, 7
  %v1201 = vrot.slane %v1200, 2
  %v1202 = vrot.slane %v804, 7
  %v1203 = vrot.slane %v1202, 2
  %v1204 = vrot.slane %v671, 7
  %v1205 = vrot.slane %v1204, 2
  %v1206 = vrot.slane %v805, 7
  %v1207 = vrot.slane %v1206, 2
  %v1208 = vrot.slane %v806, 7
  %v1209 = vrot.slane %v1208, 2
  %v1210 = vrot.slane %v807, 7
  %v1211 = vrot.slane %v1210, 2
  %v1212 = vrot.slane %v672, 7
  %v1213 = vrot.slane %v1212, 2
  %v1214 = vrot.slane %v808, 7
  %v1215 = vrot.slane %v1214, 2
  %v1216 = vrot.slane %v809, 7
  %v1217 = vrot.slane %v1216, 2
  %v1218 = vrot.slane %v810, 7
  %v1219 = vrot.slane %v1218, 2
  %v1220 = vrot.slane %v673, 7
  %v1221 = vrot.slane %v1220, 2
  %v1222 = vrot.slane %v811, 7
  %v1223 = vrot.slane %v1222, 2
  %v1224 = vrot.slane %v812, 7
  %v1225 = vrot.slane %v1224, 2
  %v1226 = vrot.slane %v813, 7
  %v1227 = vrot.slane %v1226, 2
  %v1228 = vrot.slane %v674, 7
  %v1229 = vrot.slane %v1228, 2
  %v1230 = vrot.slane %v814, 7
  %v1231 = vrot.slane %v1230, 2
  %v1232 = vrot.slane %v815, 7
  %v1233 = vrot.slane %v1232, 2
  %v1234 = vrot.slane %v816, 7
  %v1235 = vrot.slane %v1234, 2
  %v1236 = vrot.slane %v675, 7
  %v1237 = vrot.slane %v1236, 2
  %v1238 = vrot.slane %v817, 7
  %v1239 = vrot.slane %v1238, 2
  %v1240 = vrot.slane %v818, 7
  %v1241 = vrot.slane %v1240, 2
  %v1242 = vrot.slane %v819, 7
  %v1243 = vrot.slane %v1242, 2
  %v1244 = vrot.slane %v676, 7
  %v1245 = vrot.slane %v1244, 2
  %v1246 = vrot.slane %v820, 7
  %v1247 = vrot.slane %v1246, 2
  %v1248 = vrot.slane %v821, 7
  %v1249 = vrot.slane %v1248, 2
  %v1250 = vrot.slane %v822, 7
  %v1251 = vrot.slane %v1250, 2
  %v1252 = vrot.slane %v677, 7
  %v1253 = vrot.slane %v1252, 2
  %v1254 = vrot.slane %v823, 7
  %v1255 = vrot.slane %v1254, 2
  %v1256 = vrot.slane %v824, 7
  %v1257 = vrot.slane %v1256, 2
  %v1258 = vrot.slane %v825, 7
  %v1259 = vrot.slane %v1258, 2
  %v1260 = vrot.slane %v678, 7
  %v1261 = vrot.slane %v1260, 2
  %v1262 = vrot.slane %v826, 7
  %v1263 = vrot.slane %v1262, 2
  %v1264 = vrot.slane %v827, 7
  %v1265 = vrot.slane %v1264, 2
  %v1266 = vrot.slane %v828, 7
  %v1267 = vrot.slane %v1266, 2
  %v1268 = vrot.slane %v679, 7
  %v1269 = vrot.slane %v1268, 2
  %v1270 = vrot.slane %v829, 7
  %v1271 = vrot.slane %v1270, 2
  %v1272 = vrot.slane %v830, 7
  %v1273 = vrot.slane %v1272, 2
  %v1274 = vrot.slane %v831, 7
  %v1275 = vrot.slane %v1274, 2
  %v1276 = vrot.slane %v680, 7
  %v1277 = vrot.slane %v1276, 2
  %v1278 = vrot.slane %v832, 7
  %v1279 = vrot.slane %v1278, 2
  %v1280 = vrot.slane %v833, 7
  %v1281 = vrot.slane %v1280, 2
  %v1282 = vrot.slane %v834, 7
  %v1283 = vrot.slane %v1282, 2
  %v1284 = vrot.slane %v681, 7
  %v1285 = vrot.slane %v1284, 2
  %v1286 = vrot.slane %v835, 7
  %v1287 = vrot.slane %v1286, 2
  %v1288 = vrot.slane %v836, 7
  %v1289 = vrot.slane %v1288, 2
  %v1290 = vrot.slane %v837, 7
  %v1291 = vrot.slane %v1290, 2
  %v1292 = vrot.slane %v682, 7
  %v1293 = vrot.slane %v1292, 2
  %v1294 = vrot.slane %v838, 7
  %v1295 = vrot.slane %v1294, 2
  %v1296 = vrot.slane %v839, 7
  %v1297 = vrot.slane %v1296, 2
  %v1298 = vrot.slane %v840, 7
  %v1299 = vrot.slane %v1298, 2
  %v1300 = vrot.slane %v683, 7
  %v1301 = vrot.slane %v1300, 2
  %v1302 = vrot.slane %v841, 7
  %v1303 = vrot.slane %v1302, 2
  %v1304 = vrot.slane %v842, 7
  %v1305 = vrot.slane %v1304, 2
  %v1306 = vrot.slane %v843, 7
  %v1307 = vrot.slane %v1306, 2
  %v1308 = vrot.slane %v684, 7
  %v1309 = vrot.slane %v1308, 2
  %v1310 = vrot.slane %v844, 7
  %v1311 = vrot.slane %v1310, 2
  %v1312 = vrot.slane %v845, 7
  %v1313 = vrot.slane %v1312, 2
  %v1314 = vrot.slane %v846, 7
  %v1315 = vrot.slane %v1314, 2
  %v1316 = vrot.slane %v685, 7
  %v1317 = vrot.slane %v1316, 2
  %v1318 = vrot.slane %v847, 7
  %v1319 = vrot.slane %v1318, 2
  %v1320 = vrot.slane %v848, 7
  %v1321 = vrot.slane %v1320, 2
  %v1322 = vrot.slane %v849, 7
  %v1323 = vrot.slane %v1322, 2
  %v1324 = vrot.slane %v686, 7
  %v1325 = vrot.slane %v1324, 2
  %v1326 = vrot.slane %v850, 7
  %v1327 = vrot.slane %v1326, 2
  %v1328 = vrot.slane %v851, 7
  %v1329 = vrot.slane %v1328, 2
  %v1330 = vrot.slane %v852, 7
  %v1331 = vrot.slane %v1330, 2
  %v1332 = vrot.slane %v687, 7
  %v1333 = vrot.slane %v1332, 2
  %v1334 = vrot.slane %v853, 7
  %v1335 = vrot.slane %v1334, 2
  %v1336 = vrot.slane %v854, 7
  %v1337 = vrot.slane %v1336, 2
  %v1338 = vrot.slane %v855, 7
  %v1339 = vrot.slane %v1338, 2
  %v1340 = vrot.slane %v688, 7
  %v1341 = vrot.slane %v1340, 2
  %v1342 = vrot.slane %v856, 7
  %v1343 = vrot.slane %v1342, 2
  %v1344 = vrot.slane %v857, 7
  %v1345 = vrot.slane %v1344, 2
  %v1346 = vrot.slane %v858, 7
  %v1347 = vrot.slane %v1346, 2
  %v1348 = vrot.slane %v689, 7
  %v1349 = vrot.slane %v1348, 2
  %v1350 = vrot.slane %v859, 7
  %v1351 = vrot.slane %v1350, 2
  %v1352 = vrot.slane %v860, 7
  %v1353 = vrot.slane %v1352, 2
  %v1354 = vrot.slane %v861, 7
  %v1355 = vrot.slane %v1354, 2
  %v1356 = vrot.slane %v690, 7
  %v1357 = vrot.slane %v1356, 2
  %v1358 = vrot.slane %v862, 7
  %v1359 = vrot.slane %v1358, 2
  %v1360 = vrot.slane %v863, 7
  %v1361 = vrot.slane %v1360, 2
  %v1362 = vrot.slane %v864, 7
  %v1363 = vrot.slane %v1362, 2
  %v1364 = vrot.slane %v691, 7
  %v1365 = vrot.slane %v1364, 2
  %v1366 = vrot.slane %v865, 7
  %v1367 = vrot.slane %v1366, 2
  %v1368 = vrot.slane %v866, 7
  %v1369 = vrot.slane %v1368, 2
  %v1370 = vrot.slane %v867, 7
  %v1371 = vrot.slane %v1370, 2
  %v1372 = vrot.slane %v692, 7
  %v1373 = vrot.slane %v1372, 2
  %v1374 = vrot.slane %v868, 7
  %v1375 = vrot.slane %v1374, 2
  %v1376 = vrot.slane %v869, 7
  %v1377 = vrot.slane %v1376, 2
  %v1378 = vrot.slane %v870, 7
  %v1379 = vrot.slane %v1378, 2
  %v1380 = vrot.slane %v693, 7
  %v1381 = vrot.slane %v1380, 2
  %v1382 = vrot.slane %v871, 7
  %v1383 = vrot.slane %v1382, 2
  %v1384 = vrot.slane %v872, 7
  %v1385 = vrot.slane %v1384, 2
  %v1386 = vrot.slane %v873, 7
  %v1387 = vrot.slane %v1386, 2
  %v1388 = vrot.slane %v694, 7
  %v1389 = vrot.slane %v1388, 2
  %v1390 = vrot.slane %v874, 7
  %v1391 = vrot.slane %v1390, 2
  %v1392 = vrot.slane %v875, 7
  %v1393 = vrot.slane %v1392, 2
  %v1394 = vrot.slane %v876, 7
  %v1395 = vrot.slane %v1394, 2
  %v1396 = vrot.slane %v695, 7
  %v1397 = vrot.slane %v1396, 2
  %v1398 = vrot.slane %v877, 7
  %v1399 = vrot.slane %v1398, 2
  %v1400 = vrot.slane %v878, 7
  %v1401 = vrot.slane %v1400, 2
  %v1402 = vrot.slane %v879, 7
  %v1403 = vrot.slane %v1402, 2
  %v1404 = vrot.slane %v696, 7
  %v1405 = vrot.slane %v1404, 2
  %v1406 = vrot.slane %v880, 7
  %v1407 = vrot.slane %v1406, 2
  %v1408 = vrot.slane %v881, 7
  %v1409 = vrot.slane %v1408, 2
  %v1410 = vrot.slane %v882, 7
  %v1411 = vrot.slane %v1410, 2
  %v1412 = vrot.slane %v697, 7
  %v1413 = vrot.slane %v1412, 2
  %v1414 = vrot.slane %v883, 7
  %v1415 = vrot.slane %v1414, 2
  %v1416 = vrot.slane %v884, 7
  %v1417 = vrot.slane %v1416, 2
  %v1418 = vrot.slane %v885, 7
  %v1419 = vrot.slane %v1418, 2
  %v1420 = vrot.slane %v698, 7
  %v1421 = vrot.slane %v1420, 2
  %v1422 = vrot.slane %v886, 7
  %v1423 = vrot.slane %v1422, 2
  %v1424 = vrot.slane %v887, 7
  %v1425 = vrot.slane %v1424, 2
  %v1426 = vrot.slane %v888, 7
  %v1427 = vrot.slane %v1426, 2
  %v1428 = vrot.slane %v699, 7
  %v1429 = vrot.slane %v1428, 2
  %v1430 = vrot.slane %v889, 7
  %v1431 = vrot.slane %v1430, 2
  %v1432 = vrot.slane %v890, 7
  %v1433 = vrot.slane %v1432, 2
  %v1434 = vrot.slane %v891, 7
  %v1435 = vrot.slane %v1434, 2
  %v1436 = vrot.slane %v700, 7
  %v1437 = vrot.slane %v1436, 2
  %v1438 = vrot.slane %v892, 7
  %v1439 = vrot.slane %v1438, 2
  %v1440 = vrot.slane %v893, 7
  %v1441 = vrot.slane %v1440, 2
  %v1442 = vrot.slane %v894, 7
  %v1443 = vrot.slane %v1442, 2
  %v1444 = vrot.slane %v701, 7
  %v1445 = vrot.slane %v1444, 2
  %v1446 = vrot.slane %v895, 7
  %v1447 = vrot.slane %v1446, 2
  %v1448 = vrot.slane %v896, 7
  %v1449 = vrot.slane %v1448, 2
  %v1450 = vrot.slane %v897, 7
  %v1451 = vrot.slane %v1450, 2
  %v1452 = vrot.slane %v702, 7
  %v1453 = vrot.slane %v1452, 2
  %v1454 = vrot.slane %v898, 7
  %v1455 = vrot.slane %v1454, 2
  %v1456 = vrot.slane %v899, 7
  %v1457 = vrot.slane %v1456, 2
  %v1458 = vrot.slane %v900, 7
  %v1459 = vrot.slane %v1458, 2
  %v1460 = vrot.slane %v703, 7
  %v1461 = vrot.slane %v1460, 2
  %v1462 = vrot.slane %v901, 7
  %v1463 = vrot.slane %v1462, 2
  %v1464 = vrot.slane %v902, 7
  %v1465 = vrot.slane %v1464, 2
  %v1466 = vrot.slane %v903, 7
  %v1467 = vrot.slane %v1466, 2
  %v1468 = vrot.slane %v704, 7
  %v1469 = vrot.slane %v1468, 2
  %v1470 = vrot.slane %v904, 7
  %v1471 = vrot.slane %v1470, 2
  %v1472 = vrot.slane %v905, 7
  %v1473 = vrot.slane %v1472, 2
  %v1474 = vrot.slane %v906, 7
  %v1475 = vrot.slane %v1474, 2
  %v1476 = vrot.slane %v705, 7
  %v1477 = vrot.slane %v1476, 2
  %v1478 = vrot.slane %v907, 7
  %v1479 = vrot.slane %v1478, 2
  %v1480 = vrot.slane %v908, 7
  %v1481 = vrot.slane %v1480, 2
  %v1482 = vrot.slane %v909, 7
  %v1483 = vrot.slane %v1482, 2
  %v1484 = vrot.slane %v706, 7
  %v1485 = vrot.slane %v1484, 2
  %v1486 = vrot.slane %v910, 7
  %v1487 = vrot.slane %v1486, 2
  %v1488 = vrot.slane %v911, 7
  %v1489 = vrot.slane %v1488, 2
  %v1490 = vrot.slane %v912, 7
  %v1491 = vrot.slane %v1490, 2
  %v1492 = vrot.slane %v707, 7
  %v1493 = vrot.slane %v1492, 2
  %v1494 = vrot.slane %v913, 7
  %v1495 = vrot.slane %v1494, 2
  %v1496 = vrot.slane %v914, 7
  %v1497 = vrot.slane %v1496, 2
  %v1498 = vrot.slane %v915, 7
  %v1499 = vrot.slane %v1498, 2
  %v1500 = vrot.slane %v708, 7
  %v1501 = vrot.slane %v1500, 2
  %v1502 = vrot.slane %v916, 7
  %v1503 = vrot.slane %v1502, 2
  %v1504 = vrot.slane %v917, 7
  %v1505 = vrot.slane %v1504, 2
  %v1506 = vrot.slane %v918, 7
  %v1507 = vrot.slane %v1506, 2
  %v1508 = vrot.slane %v709, 7
  %v1509 = vrot.slane %v1508, 2
  %v1510 = vrot.slane %v919, 7
  %v1511 = vrot.slane %v1510, 2
  %v1512 = vrot.slane %v920, 7
  %v1513 = vrot.slane %v1512, 2
  %v1514 = vrot.slane %v921, 7
  %v1515 = vrot.slane %v1514, 2
  %v1516 = vrot.slane %v710, 7
  %v1517 = vrot.slane %v1516, 2
  %v1518 = vrot.slane %v922, 7
  %v1519 = vrot.slane %v1518, 2
  %v1520 = vrot.slane %v923, 7
  %v1521 = vrot.slane %v1520, 2
  %v1522 = vrot.slane %v924, 7
  %v1523 = vrot.slane %v1522, 2
  %v1524 = vrot.slane %v711, 7
  %v1525 = vrot.slane %v1524, 2
  %v1526 = vrot.slane %v925, 7
  %v1527 = vrot.slane %v1526, 2
  %v1528 = vrot.slane %v926, 7
  %v1529 = vrot.slane %v1528, 2
  %v1530 = vrot.slane %v927, 7
  %v1531 = vrot.slane %v1530, 2
  %v1532 = vrot.slane %v712, 7
  %v1533 = vrot.slane %v1532, 2
  %v1534 = vrot.slane %v928, 7
  %v1535 = vrot.slane %v1534, 2
  %v1536 = vrot.slane %v929, 7
  %v1537 = vrot.slane %v1536, 2
  %v1538 = vrot.slane %v930, 7
  %v1539 = vrot.slane %v1538, 2
  %v1540 = vrot.slane %v713, 7
  %v1541 = vrot.slane %v1540, 2
  %v1542 = vrot.slane %v931, 7
  %v1543 = vrot.slane %v1542, 2
  %v1544 = vrot.slane %v932, 7
  %v1545 = vrot.slane %v1544, 2
  %v1546 = vrot.slane %v933, 7
  %v1547 = vrot.slane %v1546, 2
  %v1548 = vrot.slane %v714, 7
  %v1549 = vrot.slane %v1548, 2
  %v1550 = vrot.slane %v934, 7
  %v1551 = vrot.slane %v1550, 2
  %v1552 = vrot.slane %v935, 7
  %v1553 = vrot.slane %v1552, 2
  %v1554 = vrot.slane %v936, 7
  %v1555 = vrot.slane %v1554, 2
  %v1556 = vrot.slane %v715, 7
  %v1557 = vrot.slane %v1556, 2
  %v1558 = vrot.slane %v937, 7
  %v1559 = vrot.slane %v1558, 2
  %v1560 = vrot.slane %v938, 7
  %v1561 = vrot.slane %v1560, 2
  %v1562 = vrot.slane %v939, 7
  %v1563 = vrot.slane %v1562, 2
  %v1564 = vrot.slane %v716, 7
  %v1565 = vrot.slane %v1564, 2
  %v1566 = vrot.slane %v940, 7
  %v1567 = vrot.slane %v1566, 2
  %v1568 = vrot.slane %v941, 7
  %v1569 = vrot.slane %v1568, 2
  %v1570 = vrot.slane %v942, 7
  %v1571 = vrot.slane %v1570, 2
  %v1572 = vrot.slane %v717, 7
  %v1573 = vrot.slane %v1572, 2
  %v1574 = vrot.slane %v943, 7
  %v1575 = vrot.slane %v1574, 2
  %v1576 = vrot.slane %v944, 7
  %v1577 = vrot.slane %v1576, 2
  %v1578 = vrot.slane %v945, 7
  %v1579 = vrot.slane %v1578, 2
  %v1580 = vrot.slane %v718, 7
  %v1581 = vrot.slane %v1580, 2
  %v1582 = vrot.slane %v946, 7
  %v1583 = vrot.slane %v1582, 2
  %v1584 = vrot.slane %v947, 7
  %v1585 = vrot.slane %v1584, 2
  %v1586 = vrot.slane %v948, 7
  %v1587 = vrot.slane %v1586, 2
  %v1588 = vrot.slane %v719, 7
  %v1589 = vrot.slane %v1588, 2
  %v1590 = vrot.slane %v949, 7
  %v1591 = vrot.slane %v1590, 2
  %v1592 = vrot.slane %v950, 7
  %v1593 = vrot.slane %v1592, 2
  %v1594 = vrot.slane %v951, 7
  %v1595 = vrot.slane %v1594, 2
  %v1596 = vrot.slane %v720, 7
  %v1597 = vrot.slane %v1596, 2
  %v1598 = vrot.slane %v952, 7
  %v1599 = vrot.slane %v1598, 2
  %v1600 = vrot.slane %v953, 7
  %v1601 = vrot.slane %v1600, 2
  %v1602 = vrot.slane %v954, 7
  %v1603 = vrot.slane %v1602, 2
  %v1604 = vrot.slane %v721, 7
  %v1605 = vrot.slane %v1604, 2
  %v1606 = vrot.slane %v955, 7
  %v1607 = vrot.slane %v1606, 2
  %v1608 = vrot.slane %v956, 7
  %v1609 = vrot.slane %v1608, 2
  %v1610 = vrot.slane %v957, 7
  %v1611 = vrot.slane %v1610, 2
  %v1612 = vrot.slane %v722, 7
  %v1613 = vrot.slane %v1612, 2
  %v1614 = vrot.slane %v958, 7
  %v1615 = vrot.slane %v1614, 2
  %v1616 = vrot.slane %v959, 7
  %v1617 = vrot.slane %v1616, 2
  %v1618 = vrot.slane %v960, 7
  %v1619 = vrot.slane %v1618, 2
  %v1620 = vrot.slane %v723, 7
  %v1621 = vrot.slane %v1620, 2
  %v1622 = vrot.slane %v961, 7
  %v1623 = vrot.slane %v1622, 2
  %v1624 = vrot.slane %v962, 7
  %v1625 = vrot.slane %v1624, 2
  %v1626 = vrot.slane %v963, 7
  %v1627 = vrot.slane %v1626, 2
  %v1628 = vrot.slane %v724, 7
  %v1629 = vrot.slane %v1628, 2
  %v1630 = vrot.slane %v964, 7
  %v1631 = vrot.slane %v1630, 2
  %v1632 = vrot.slane %v965, 7
  %v1633 = vrot.slane %v1632, 2
  %v1634 = vrot.slane %v966, 7
  %v1635 = vrot.slane %v1634, 2
  %v1636 = vrot.slane %v725, 7
  %v1637 = vrot.slane %v1636, 2
  %v1638 = vrot.slane %v967, 7
  %v1639 = vrot.slane %v1638, 2
  %v1640 = vrot.slane %v968, 7
  %v1641 = vrot.slane %v1640, 2
  %v1642 = vrot.slane %v969, 7
  %v1643 = vrot.slane %v1642, 2
  %v1644 = vrot.slane %v726, 7
  %v1645 = vrot.slane %v1644, 2
  %v1646 = vrot.slane %v970, 7
  %v1647 = vrot.slane %v1646, 2
  %v1648 = vrot.slane %v971, 7
  %v1649 = vrot.slane %v1648, 2
  %v1650 = vrot.slane %v972, 7
  %v1651 = vrot.slane %v1650, 2
  %v1652 = vrot.slane %v727, 7
  %v1653 = vrot.slane %v1652, 2
  %v1654 = vrot.slane %v973, 7
  %v1655 = vrot.slane %v1654, 2
  %v1656 = vrot.slane %v974, 7
  %v1657 = vrot.slane %v1656, 2
  %v1658 = vrot.slane %v975, 7
  %v1659 = vrot.slane %v1658, 2
  %v1660 = vrot.slane %v728, 7
  %v1661 = vrot.slane %v1660, 2
  %v1662 = vrot.slane %v976, 7
  %v1663 = vrot.slane %v1662, 2
  %v1664 = vrot.slane %v977, 7
  %v1665 = vrot.slane %v1664, 2
  %v1666 = vrot.slane %v978, 7
  %v1667 = vrot.slane %v1666, 2
  %v1668 = vrot.slane %v729, 7
  %v1669 = vrot.slane %v1668, 2
  %v1670 = vrot.slane %v979, 7
  %v1671 = vrot.slane %v1670, 2
  %v1672 = vrot.slane %v980, 7
  %v1673 = vrot.slane %v1672, 2
  %v1674 = vrot.slane %v981, 7
  %v1675 = vrot.slane %v1674, 2
  %v1676 = vrot.slane %v730, 7
  %v1677 = vrot.slane %v1676, 2
  %v1678 = vrot.slane %v982, 7
  %v1679 = vrot.slane %v1678, 2
  %v1680 = vrot.slane %v983, 7
  %v1681 = vrot.slane %v1680, 2
  %v1682 = vrot.slane %v984, 7
  %v1683 = vrot.slane %v1682, 2
  %v1684 = vrot.slane %v731, 7
  %v1685 = vrot.slane %v1684, 2
  %v1686 = vrot.slane %v985, 7
  %v1687 = vrot.slane %v1686, 2
  %v1688 = vrot.slane %v986, 7
  %v1689 = vrot.slane %v1688, 2
  %v1690 = vrot.slane %v987, 7
  %v1691 = vrot.slane %v1690, 2
  %v1948 = vmax.f32 %v668, %v1181
  %v1949 = vmax.f32 %v796, %v1183
  %v1950 = vmax.f32 %v797, %v1185
  %v1951 = vmax.f32 %v798, %v1187
  %v1952 = vmax.f32 %v669, %v1189
  %v1953 = vmax.f32 %v799, %v1191
  %v1954 = vmax.f32 %v800, %v1193
  %v1955 = vmax.f32 %v801, %v1195
  %v1956 = vmax.f32 %v670, %v1197
  %v1957 = vmax.f32 %v802, %v1199
  %v1958 = vmax.f32 %v803, %v1201
  %v1959 = vmax.f32 %v804, %v1203
  %v1960 = vmax.f32 %v671, %v1205
  %v1961 = vmax.f32 %v805, %v1207
  %v1962 = vmax.f32 %v806, %v1209
  %v1963 = vmax.f32 %v807, %v1211
  %v1964 = vmax.f32 %v672, %v1213
  %v1965 = vmax.f32 %v808, %v1215
  %v1966 = vmax.f32 %v809, %v1217
  %v1967 = vmax.f32 %v810, %v1219
  %v1968 = vmax.f32 %v673, %v1221
  %v1969 = vmax.f32 %v811, %v1223
  %v1970 = vmax.f32 %v812, %v1225
  %v1971 = vmax.f32 %v813, %v1227
  %v1972 = vmax.f32 %v674, %v1229
  %v1973 = vmax.f32 %v814, %v1231
  %v1974 = vmax.f32 %v815, %v1233
  %v1975 = vmax.f32 %v816, %v1235
  %v1976 = vmax.f32 %v675, %v1237
  %v1977 = vmax.f32 %v817, %v1239
  %v1978 = vmax.f32 %v818, %v1241
  %v1979 = vmax.f32 %v819, %v1243
  %v1980 = vmax.f32 %v676, %v1245
  %v1981 = vmax.f32 %v820, %v1247
  %v1982 = vmax.f32 %v821, %v1249
  %v1983 = vmax.f32 %v822, %v1251
  %v1984 = vmax.f32 %v677, %v1253
  %v1985 = vmax.f32 %v823, %v1255
  %v1986 = vmax.f32 %v824, %v1257
  %v1987 = vmax.f32 %v825, %v1259
  %v1988 = vmax.f32 %v678, %v1261
  %v1989 = vmax.f32 %v826, %v1263
  %v1990 = vmax.f32 %v827, %v1265
  %v1991 = vmax.f32 %v828, %v1267
  %v1992 = vmax.f32 %v679, %v1269
  %v1993 = vmax.f32 %v829, %v1271
  %v1994 = vmax.f32 %v830, %v1273
  %v1995 = vmax.f32 %v831, %v1275
  %v1996 = vmax.f32 %v680, %v1277
  %v1997 = vmax.f32 %v832, %v1279
  %v1998 = vmax.f32 %v833, %v1281
  %v1999 = vmax.f32 %v834, %v1283
  %v2000 = vmax.f32 %v681, %v1285
  %v2001 = vmax.f32 %v835, %v1287
  %v2002 = vmax.f32 %v836, %v1289
  %v2003 = vmax.f32 %v837, %v1291
  %v2004 = vmax.f32 %v682, %v1293
  %v2005 = vmax.f32 %v838, %v1295
  %v2006 = vmax.f32 %v839, %v1297
  %v2007 = vmax.f32 %v840, %v1299
  %v2008 = vmax.f32 %v683, %v1301
  %v2009 = vmax.f32 %v841, %v1303
  %v2010 = vmax.f32 %v842, %v1305
  %v2011 = vmax.f32 %v843, %v1307
  %v2012 = vmax.f32 %v684, %v1309
  %v2013 = vmax.f32 %v844, %v1311
  %v2014 = vmax.f32 %v845, %v1313
  %v2015 = vmax.f32 %v846, %v1315
  %v2016 = vmax.f32 %v685, %v1317
  %v2017 = vmax.f32 %v847, %v1319
  %v2018 = vmax.f32 %v848, %v1321
  %v2019 = vmax.f32 %v849, %v1323
  %v2020 = vmax.f32 %v686, %v1325
  %v2021 = vmax.f32 %v850, %v1327
  %v2022 = vmax.f32 %v851, %v1329
  %v2023 = vmax.f32 %v852, %v1331
  %v2024 = vmax.f32 %v687, %v1333
  %v2025 = vmax.f32 %v853, %v1335
  %v2026 = vmax.f32 %v854, %v1337
  %v2027 = vmax.f32 %v855, %v1339
  %v2028 = vmax.f32 %v688, %v1341
  %v2029 = vmax.f32 %v856, %v1343
  %v2030 = vmax.f32 %v857, %v1345
  %v2031 = vmax.f32 %v858, %v1347
  %v2032 = vmax.f32 %v689, %v1349
  %v2033 = vmax.f32 %v859, %v1351
  %v2034 = vmax.f32 %v860, %v1353
  %v2035 = vmax.f32 %v861, %v1355
  %v2036 = vmax.f32 %v690, %v1357
  %v2037 = vmax.f32 %v862, %v1359
  %v2038 = vmax.f32 %v863, %v1361
  %v2039 = vmax.f32 %v864, %v1363
  %v2040 = vmax.f32 %v691, %v1365
  %v2041 = vmax.f32 %v865, %v1367
  %v2042 = vmax.f32 %v866, %v1369
  %v2043 = vmax.f32 %v867, %v1371
  %v2044 = vmax.f32 %v692, %v1373
  %v2045 = vmax.f32 %v868, %v1375
  %v2046 = vmax.f32 %v869, %v1377
  %v2047 = vmax.f32 %v870, %v1379
  %v2048 = vmax.f32 %v693, %v1381
  %v2049 = vmax.f32 %v871, %v1383
  %v2050 = vmax.f32 %v872, %v1385
  %v2051 = vmax.f32 %v873, %v1387
  %v2052 = vmax.f32 %v694, %v1389
  %v2053 = vmax.f32 %v874, %v1391
  %v2054 = vmax.f32 %v875, %v1393
  %v2055 = vmax.f32 %v876, %v1395
  %v2056 = vmax.f32 %v695, %v1397
  %v2057 = vmax.f32 %v877, %v1399
  %v2058 = vmax.f32 %v878, %v1401
  %v2059 = vmax.f32 %v879, %v1403
  %v2060 = vmax.f32 %v696, %v1405
  %v2061 = vmax.f32 %v880, %v1407
  %v2062 = vmax.f32 %v881, %v1409
  %v2063 = vmax.f32 %v882, %v1411
  %v2064 = vmax.f32 %v697, %v1413
  %v2065 = vmax.f32 %v883, %v1415
  %v2066 = vmax.f32 %v884, %v1417
  %v2067 = vmax.f32 %v885, %v1419
  %v2068 = vmax.f32 %v698, %v1421
  %v2069 = vmax.f32 %v886, %v1423
  %v2070 = vmax.f32 %v887, %v1425
  %v2071 = vmax.f32 %v888, %v1427
  %v2072 = vmax.f32 %v699, %v1429
  %v2073 = vmax.f32 %v889, %v1431
  %v2074 = vmax.f32 %v890, %v1433
  %v2075 = vmax.f32 %v891, %v1435
  %v2076 = vmax.f32 %v700, %v1437
  %v2077 = vmax.f32 %v892, %v1439
  %v2078 = vmax.f32 %v893, %v1441
  %v2079 = vmax.f32 %v894, %v1443
  %v2080 = vmax.f32 %v701, %v1445
  %v2081 = vmax.f32 %v895, %v1447
  %v2082 = vmax.f32 %v896, %v1449
  %v2083 = vmax.f32 %v897, %v1451
  %v2084 = vmax.f32 %v702, %v1453
  %v2085 = vmax.f32 %v898, %v1455
  %v2086 = vmax.f32 %v899, %v1457
  %v2087 = vmax.f32 %v900, %v1459
  %v2088 = vmax.f32 %v703, %v1461
  %v2089 = vmax.f32 %v901, %v1463
  %v2090 = vmax.f32 %v902, %v1465
  %v2091 = vmax.f32 %v903, %v1467
  %v2092 = vmax.f32 %v704, %v1469
  %v2093 = vmax.f32 %v904, %v1471
  %v2094 = vmax.f32 %v905, %v1473
  %v2095 = vmax.f32 %v906, %v1475
  %v2096 = vmax.f32 %v705, %v1477
  %v2097 = vmax.f32 %v907, %v1479
  %v2098 = vmax.f32 %v908, %v1481
  %v2099 = vmax.f32 %v909, %v1483
  %v2100 = vmax.f32 %v706, %v1485
  %v2101 = vmax.f32 %v910, %v1487
  %v2102 = vmax.f32 %v911, %v1489
  %v2103 = vmax.f32 %v912, %v1491
  %v2104 = vmax.f32 %v707, %v1493
  %v2105 = vmax.f32 %v913, %v1495
  %v2106 = vmax.f32 %v914, %v1497
  %v2107 = vmax.f32 %v915, %v1499
  %v2108 = vmax.f32 %v708, %v1501
  %v2109 = vmax.f32 %v916, %v1503
  %v2110 = vmax.f32 %v917, %v1505
  %v2111 = vmax.f32 %v918, %v1507
  %v2112 = vmax.f32 %v709, %v1509
  %v2113 = vmax.f32 %v919, %v1511
  %v2114 = vmax.f32 %v920, %v1513
  %v2115 = vmax.f32 %v921, %v1515
  %v2116 = vmax.f32 %v710, %v1517
  %v2117 = vmax.f32 %v922, %v1519
  %v2118 = vmax.f32 %v923, %v1521
  %v2119 = vmax.f32 %v924, %v1523
  %v2120 = vmax.f32 %v711, %v1525
  %v2121 = vmax.f32 %v925, %v1527
  %v2122 = vmax.f32 %v926, %v1529
  %v2123 = vmax.f32 %v927, %v1531
  %v2124 = vmax.f32 %v712, %v1533
  %v2125 = vmax.f32 %v928, %v1535
  %v2126 = vmax.f32 %v929, %v1537
  %v2127 = vmax.f32 %v930, %v1539
  %v2128 = vmax.f32 %v713, %v1541
  %v2129 = vmax.f32 %v931, %v1543
  %v2130 = vmax.f32 %v932, %v1545
  %v2131 = vmax.f32 %v933, %v1547
  %v2132 = vmax.f32 %v714, %v1549
  %v2133 = vmax.f32 %v934, %v1551
  %v2134 = vmax.f32 %v935, %v1553
  %v2135 = vmax.f32 %v936, %v1555
  %v2136 = vmax.f32 %v715, %v1557
  %v2137 = vmax.f32 %v937, %v1559
  %v2138 = vmax.f32 %v938, %v1561
  %v2139 = vmax.f32 %v939, %v1563
  %v2140 = vmax.f32 %v716, %v1565
  %v2141 = vmax.f32 %v940, %v1567
  %v2142 = vmax.f32 %v941, %v1569
  %v2143 = vmax.f32 %v942, %v1571
  %v2144 = vmax.f32 %v717, %v1573
  %v2145 = vmax.f32 %v943, %v1575
  %v2146 = vmax.f32 %v944, %v1577
  %v2147 = vmax.f32 %v945, %v1579
  %v2148 = vmax.f32 %v718, %v1581
  %v2149 = vmax.f32 %v946, %v1583
  %v2150 = vmax.f32 %v947, %v1585
  %v2151 = vmax.f32 %v948, %v1587
  %v2152 = vmax.f32 %v719, %v1589
  %v2153 = vmax.f32 %v949, %v1591
  %v2154 = vmax.f32 %v950, %v1593
  %v2155 = vmax.f32 %v951, %v1595
  %v2156 = vmax.f32 %v720, %v1597
  %v2157 = vmax.f32 %v952, %v1599
  %v2158 = vmax.f32 %v953, %v1601
  %v2159 = vmax.f32 %v954, %v1603
  %v2160 = vmax.f32 %v721, %v1605
  %v2161 = vmax.f32 %v955, %v1607
  %v2162 = vmax.f32 %v956, %v1609
  %v2163 = vmax.f32 %v957, %v1611
  %v2164 = vmax.f32 %v722, %v1613
  %v2165 = vmax.f32 %v958, %v1615
  %v2166 = vmax.f32 %v959, %v1617
  %v2167 = vmax.f32 %v960, %v1619
  %v2168 = vmax.f32 %v723, %v1621
  %v2169 = vmax.f32 %v961, %v1623
  %v2170 = vmax.f32 %v962, %v1625
  %v2171 = vmax.f32 %v963, %v1627
  %v2172 = vmax.f32 %v724, %v1629
  %v2173 = vmax.f32 %v964, %v1631
  %v2174 = vmax.f32 %v965, %v1633
  %v2175 = vmax.f32 %v966, %v1635
  %v2176 = vmax.f32 %v725, %v1637
  %v2177 = vmax.f32 %v967, %v1639
  %v2178 = vmax.f32 %v968, %v1641
  %v2179 = vmax.f32 %v969, %v1643
  %v2180 = vmax.f32 %v726, %v1645
  %v2181 = vmax.f32 %v970, %v1647
  %v2182 = vmax.f32 %v971, %v1649
  %v2183 = vmax.f32 %v972, %v1651
  %v2184 = vmax.f32 %v727, %v1653
  %v2185 = vmax.f32 %v973, %v1655
  %v2186 = vmax.f32 %v974, %v1657
  %v2187 = vmax.f32 %v975, %v1659
  %v2188 = vmax.f32 %v728, %v1661
  %v2189 = vmax.f32 %v976, %v1663
  %v2190 = vmax.f32 %v977, %v1665
  %v2191 = vmax.f32 %v978, %v1667
  %v2192 = vmax.f32 %v729, %v1669
  %v2193 = vmax.f32 %v979, %v1671
  %v2194 = vmax.f32 %v980, %v1673
  %v2195 = vmax.f32 %v981, %v1675
  %v2196 = vmax.f32 %v730, %v1677
  %v2197 = vmax.f32 %v982, %v1679
  %v2198 = vmax.f32 %v983, %v1681
  %v2199 = vmax.f32 %v984, %v1683
  %v2200 = vmax.f32 %v731, %v1685
  %v2201 = vmax.f32 %v985, %v1687
  %v2202 = vmax.f32 %v986, %v1689
  %v2203 = vmax.f32 %v987, %v1691
  %v2204 = vmax.f32 %v1948, %v1956
  %v2205 = vmax.f32 %v1949, %v1957
  %v2206 = vmax.f32 %v1950, %v1958
  %v2207 = vmax.f32 %v1951, %v1959
  %v2208 = vmax.f32 %v1952, %v1960
  %v2209 = vmax.f32 %v1953, %v1961
  %v2210 = vmax.f32 %v1954, %v1962
  %v2211 = vmax.f32 %v1955, %v1963
  %v2212 = vmax.f32 %v1964, %v1972
  %v2213 = vmax.f32 %v1965, %v1973
  %v2214 = vmax.f32 %v1966, %v1974
  %v2215 = vmax.f32 %v1967, %v1975
  %v2216 = vmax.f32 %v1968, %v1976
  %v2217 = vmax.f32 %v1969, %v1977
  %v2218 = vmax.f32 %v1970, %v1978
  %v2219 = vmax.f32 %v1971, %v1979
  %v2220 = vmax.f32 %v1980, %v1988
  %v2221 = vmax.f32 %v1981, %v1989
  %v2222 = vmax.f32 %v1982, %v1990
  %v2223 = vmax.f32 %v1983, %v1991
  %v2224 = vmax.f32 %v1984, %v1992
  %v2225 = vmax.f32 %v1985, %v1993
  %v2226 = vmax.f32 %v1986, %v1994
  %v2227 = vmax.f32 %v1987, %v1995
  %v2228 = vmax.f32 %v1996, %v2004
  %v2229 = vmax.f32 %v1997, %v2005
  %v2230 = vmax.f32 %v1998, %v2006
  %v2231 = vmax.f32 %v1999, %v2007
  %v2232 = vmax.f32 %v2000, %v2008
  %v2233 = vmax.f32 %v2001, %v2009
  %v2234 = vmax.f32 %v2002, %v2010
  %v2235 = vmax.f32 %v2003, %v2011
  %v2236 = vmax.f32 %v2012, %v2020
  %v2237 = vmax.f32 %v2013, %v2021
  %v2238 = vmax.f32 %v2014, %v2022
  %v2239 = vmax.f32 %v2015, %v2023
  %v2240 = vmax.f32 %v2016, %v2024
  %v2241 = vmax.f32 %v2017, %v2025
  %v2242 = vmax.f32 %v2018, %v2026
  %v2243 = vmax.f32 %v2019, %v2027
  %v2244 = vmax.f32 %v2028, %v2036
  %v2245 = vmax.f32 %v2029, %v2037
  %v2246 = vmax.f32 %v2030, %v2038
  %v2247 = vmax.f32 %v2031, %v2039
  %v2248 = vmax.f32 %v2032, %v2040
  %v2249 = vmax.f32 %v2033, %v2041
  %v2250 = vmax.f32 %v2034, %v2042
  %v2251 = vmax.f32 %v2035, %v2043
  %v2252 = vmax.f32 %v2044, %v2052
  %v2253 = vmax.f32 %v2045, %v2053
  %v2254 = vmax.f32 %v2046, %v2054
  %v2255 = vmax.f32 %v2047, %v2055
  %v2256 = vmax.f32 %v2048, %v2056
  %v2257 = vmax.f32 %v2049, %v2057
  %v2258 = vmax.f32 %v2050, %v2058
  %v2259 = vmax.f32 %v2051, %v2059
  %v2260 = vmax.f32 %v2060, %v2068
  %v2261 = vmax.f32 %v2061, %v2069
  %v2262 = vmax.f32 %v2062, %v2070
  %v2263 = vmax.f32 %v2063, %v2071
  %v2264 = vmax.f32 %v2064, %v2072
  %v2265 = vmax.f32 %v2065, %v2073
  %v2266 = vmax.f32 %v2066, %v2074
  %v2267 = vmax.f32 %v2067, %v2075
  %v2268 = vmax.f32 %v2076, %v2084
  %v2269 = vmax.f32 %v2077, %v2085
  %v2270 = vmax.f32 %v2078, %v2086
  %v2271 = vmax.f32 %v2079, %v2087
  %v2272 = vmax.f32 %v2080, %v2088
  %v2273 = vmax.f32 %v2081, %v2089
  %v2274 = vmax.f32 %v2082, %v2090
  %v2275 = vmax.f32 %v2083, %v2091
  %v2276 = vmax.f32 %v2092, %v2100
  %v2277 = vmax.f32 %v2093, %v2101
  %v2278 = vmax.f32 %v2094, %v2102
  %v2279 = vmax.f32 %v2095, %v2103
  %v2280 = vmax.f32 %v2096, %v2104
  %v2281 = vmax.f32 %v2097, %v2105
  %v2282 = vmax.f32 %v2098, %v2106
  %v2283 = vmax.f32 %v2099, %v2107
  %v2284 = vmax.f32 %v2108, %v2116
  %v2285 = vmax.f32 %v2109, %v2117
  %v2286 = vmax.f32 %v2110, %v2118
  %v2287 = vmax.f32 %v2111, %v2119
  %v2288 = vmax.f32 %v2112, %v2120
  %v2289 = vmax.f32 %v2113, %v2121
  %v2290 = vmax.f32 %v2114, %v2122
  %v2291 = vmax.f32 %v2115, %v2123
  %v2292 = vmax.f32 %v2124, %v2132
  %v2293 = vmax.f32 %v2125, %v2133
  %v2294 = vmax.f32 %v2126, %v2134
  %v2295 = vmax.f32 %v2127, %v2135
  %v2296 = vmax.f32 %v2128, %v2136
  %v2297 = vmax.f32 %v2129, %v2137
  %v2298 = vmax.f32 %v2130, %v2138
  %v2299 = vmax.f32 %v2131, %v2139
  %v2300 = vmax.f32 %v2140, %v2148
  %v2301 = vmax.f32 %v2141, %v2149
  %v2302 = vmax.f32 %v2142, %v2150
  %v2303 = vmax.f32 %v2143, %v2151
  %v2304 = vmax.f32 %v2144, %v2152
  %v2305 = vmax.f32 %v2145, %v2153
  %v2306 = vmax.f32 %v2146, %v2154
  %v2307 = vmax.f32 %v2147, %v2155
  %v2308 = vmax.f32 %v2156, %v2164
  %v2309 = vmax.f32 %v2157, %v2165
  %v2310 = vmax.f32 %v2158, %v2166
  %v2311 = vmax.f32 %v2159, %v2167
  %v2312 = vmax.f32 %v2160, %v2168
  %v2313 = vmax.f32 %v2161, %v2169
  %v2314 = vmax.f32 %v2162, %v2170
  %v2315 = vmax.f32 %v2163, %v2171
  %v2316 = vmax.f32 %v2172, %v2180
  %v2317 = vmax.f32 %v2173, %v2181
  %v2318 = vmax.f32 %v2174, %v2182
  %v2319 = vmax.f32 %v2175, %v2183
  %v2320 = vmax.f32 %v2176, %v2184
  %v2321 = vmax.f32 %v2177, %v2185
  %v2322 = vmax.f32 %v2178, %v2186
  %v2323 = vmax.f32 %v2179, %v2187
  %v2324 = vmax.f32 %v2188, %v2196
  %v2325 = vmax.f32 %v2189, %v2197
  %v2326 = vmax.f32 %v2190, %v2198
  %v2327 = vmax.f32 %v2191, %v2199
  %v2328 = vmax.f32 %v2192, %v2200
  %v2329 = vmax.f32 %v2193, %v2201
  %v2330 = vmax.f32 %v2194, %v2202
  %v2331 = vmax.f32 %v2195, %v2203
  %v2460 = vperm.slane %v2204, 0
  %v2461 = vperm.slane %v2205, 0
  %v2462 = vperm.slane %v2206, 0
  %v2463 = vperm.slane %v2207, 0
  %v2464 = vperm.slane %v2208, 0
  %v2465 = vperm.slane %v2209, 0
  %v2466 = vperm.slane %v2210, 0
  %v2467 = vperm.slane %v2211, 0
  %v2468 = vperm.slane %v2212, 0
  %v2469 = vperm.slane %v2213, 0
  %v2470 = vperm.slane %v2214, 0
  %v2471 = vperm.slane %v2215, 0
  %v2472 = vperm.slane %v2216, 0
  %v2473 = vperm.slane %v2217, 0
  %v2474 = vperm.slane %v2218, 0
  %v2475 = vperm.slane %v2219, 0
  %v2476 = vperm.slane %v2220, 0
  %v2477 = vperm.slane %v2221, 0
  %v2478 = vperm.slane %v2222, 0
  %v2479 = vperm.slane %v2223, 0
  %v2480 = vperm.slane %v2224, 0
  %v2481 = vperm.slane %v2225, 0
  %v2482 = vperm.slane %v2226, 0
  %v2483 = vperm.slane %v2227, 0
  %v2484 = vperm.slane %v2228, 0
  %v2485 = vperm.slane %v2229, 0
  %v2486 = vperm.slane %v2230, 0
  %v2487 = vperm.slane %v2231, 0
  %v2488 = vperm.slane %v2232, 0
  %v2489 = vperm.slane %v2233, 0
  %v2490 = vperm.slane %v2234, 0
  %v2491 = vperm.slane %v2235, 0
  %v2492 = vperm.slane %v2236, 0
  %v2493 = vperm.slane %v2237, 0
  %v2494 = vperm.slane %v2238, 0
  %v2495 = vperm.slane %v2239, 0
  %v2496 = vperm.slane %v2240, 0
  %v2497 = vperm.slane %v2241, 0
  %v2498 = vperm.slane %v2242, 0
  %v2499 = vperm.slane %v2243, 0
  %v2500 = vperm.slane %v2244, 0
  %v2501 = vperm.slane %v2245, 0
  %v2502 = vperm.slane %v2246, 0
  %v2503 = vperm.slane %v2247, 0
  %v2504 = vperm.slane %v2248, 0
  %v2505 = vperm.slane %v2249, 0
  %v2506 = vperm.slane %v2250, 0
  %v2507 = vperm.slane %v2251, 0
  %v2508 = vperm.slane %v2252, 0
  %v2509 = vperm.slane %v2253, 0
  %v2510 = vperm.slane %v2254, 0
  %v2511 = vperm.slane %v2255, 0
  %v2512 = vperm.slane %v2256, 0
  %v2513 = vperm.slane %v2257, 0
  %v2514 = vperm.slane %v2258, 0
  %v2515 = vperm.slane %v2259, 0
  %v2516 = vperm.slane %v2260, 0
  %v2517 = vperm.slane %v2261, 0
  %v2518 = vperm.slane %v2262, 0
  %v2519 = vperm.slane %v2263, 0
  %v2520 = vperm.slane %v2264, 0
  %v2521 = vperm.slane %v2265, 0
  %v2522 = vperm.slane %v2266, 0
  %v2523 = vperm.slane %v2267, 0
  %v2524 = vperm.slane %v2268, 0
  %v2525 = vperm.slane %v2269, 0
  %v2526 = vperm.slane %v2270, 0
  %v2527 = vperm.slane %v2271, 0
  %v2528 = vperm.slane %v2272, 0
  %v2529 = vperm.slane %v2273, 0
  %v2530 = vperm.slane %v2274, 0
  %v2531 = vperm.slane %v2275, 0
  %v2532 = vperm.slane %v2276, 0
  %v2533 = vperm.slane %v2277, 0
  %v2534 = vperm.slane %v2278, 0
  %v2535 = vperm.slane %v2279, 0
  %v2536 = vperm.slane %v2280, 0
  %v2537 = vperm.slane %v2281, 0
  %v2538 = vperm.slane %v2282, 0
  %v2539 = vperm.slane %v2283, 0
  %v2540 = vperm.slane %v2284, 0
  %v2541 = vperm.slane %v2285, 0
  %v2542 = vperm.slane %v2286, 0
  %v2543 = vperm.slane %v2287, 0
  %v2544 = vperm.slane %v2288, 0
  %v2545 = vperm.slane %v2289, 0
  %v2546 = vperm.slane %v2290, 0
  %v2547 = vperm.slane %v2291, 0
  %v2548 = vperm.slane %v2292, 0
  %v2549 = vperm.slane %v2293, 0
  %v2550 = vperm.slane %v2294, 0
  %v2551 = vperm.slane %v2295, 0
  %v2552 = vperm.slane %v2296, 0
  %v2553 = vperm.slane %v2297, 0
  %v2554 = vperm.slane %v2298, 0
  %v2555 = vperm.slane %v2299, 0
  %v2556 = vperm.slane %v2300, 0
  %v2557 = vperm.slane %v2301, 0
  %v2558 = vperm.slane %v2302, 0
  %v2559 = vperm.slane %v2303, 0
  %v2560 = vperm.slane %v2304, 0
  %v2561 = vperm.slane %v2305, 0
  %v2562 = vperm.slane %v2306, 0
  %v2563 = vperm.slane %v2307, 0
  %v2564 = vperm.slane %v2308, 0
  %v2565 = vperm.slane %v2309, 0
  %v2566 = vperm.slane %v2310, 0
  %v2567 = vperm.slane %v2311, 0
  %v2568 = vperm.slane %v2312, 0
  %v2569 = vperm.slane %v2313, 0
  %v2570 = vperm.slane %v2314, 0
  %v2571 = vperm.slane %v2315, 0
  %v2572 = vperm.slane %v2316, 0
  %v2573 = vperm.slane %v2317, 0
  %v2574 = vperm.slane %v2318, 0
  %v2575 = vperm.slane %v2319, 0
  %v2576 = vperm.slane %v2320, 0
  %v2577 = vperm.slane %v2321, 0
  %v2578 = vperm.slane %v2322, 0
  %v2579 = vperm.slane %v2323, 0
  %v2580 = vperm.slane %v2324, 0
  %v2581 = vperm.slane %v2325, 0
  %v2582 = vperm.slane %v2326, 0
  %v2583 = vperm.slane %v2327, 0
  %v2584 = vperm.slane %v2328, 0
  %v2585 = vperm.slane %v2329, 0
  %v2586 = vperm.slane %v2330, 0
  %v2587 = vperm.slane %v2331, 0
  %vm2588 = vcmask 1041409
  %v2589 = vsel %vm2588, %v2461, %v2460
  %vm2590 = vcmask 1042434
  %v2591 = vsel %vm2590, %v2462, %v2589
  %vm2592 = vcmask 1043459
  %v2593 = vsel %vm2592, %v2463, %v2591
  %vm2594 = vcmask 1044484
  %v2595 = vsel %vm2594, %v2464, %v2593
  %vm2596 = vcmask 1045509
  %v2597 = vsel %vm2596, %v2465, %v2595
  %vm2598 = vcmask 1046534
  %v2599 = vsel %vm2598, %v2466, %v2597
  %vm2600 = vcmask 1047559
  %v2601 = vsel %vm2600, %v2467, %v2599
  %v2602 = vsel %vm2588, %v2469, %v2468
  %v2603 = vsel %vm2590, %v2470, %v2602
  %v2604 = vsel %vm2592, %v2471, %v2603
  %v2605 = vsel %vm2594, %v2472, %v2604
  %v2606 = vsel %vm2596, %v2473, %v2605
  %v2607 = vsel %vm2598, %v2474, %v2606
  %v2608 = vsel %vm2600, %v2475, %v2607
  %v2609 = vsel %vm2588, %v2477, %v2476
  %v2610 = vsel %vm2590, %v2478, %v2609
  %v2611 = vsel %vm2592, %v2479, %v2610
  %v2612 = vsel %vm2594, %v2480, %v2611
  %v2613 = vsel %vm2596, %v2481, %v2612
  %v2614 = vsel %vm2598, %v2482, %v2613
  %v2615 = vsel %vm2600, %v2483, %v2614
  %v2616 = vsel %vm2588, %v2485, %v2484
  %v2617 = vsel %vm2590, %v2486, %v2616
  %v2618 = vsel %vm2592, %v2487, %v2617
  %v2619 = vsel %vm2594, %v2488, %v2618
  %v2620 = vsel %vm2596, %v2489, %v2619
  %v2621 = vsel %vm2598, %v2490, %v2620
  %v2622 = vsel %vm2600, %v2491, %v2621
  %v2623 = vsel %vm2588, %v2493, %v2492
  %v2624 = vsel %vm2590, %v2494, %v2623
  %v2625 = vsel %vm2592, %v2495, %v2624
  %v2626 = vsel %vm2594, %v2496, %v2625
  %v2627 = vsel %vm2596, %v2497, %v2626
  %v2628 = vsel %vm2598, %v2498, %v2627
  %v2629 = vsel %vm2600, %v2499, %v2628
  %v2630 = vsel %vm2588, %v2501, %v2500
  %v2631 = vsel %vm2590, %v2502, %v2630
  %v2632 = vsel %vm2592, %v2503, %v2631
  %v2633 = vsel %vm2594, %v2504, %v2632
  %v2634 = vsel %vm2596, %v2505, %v2633
  %v2635 = vsel %vm2598, %v2506, %v2634
  %v2636 = vsel %vm2600, %v2507, %v2635
  %v2637 = vsel %vm2588, %v2509, %v2508
  %v2638 = vsel %vm2590, %v2510, %v2637
  %v2639 = vsel %vm2592, %v2511, %v2638
  %v2640 = vsel %vm2594, %v2512, %v2639
  %v2641 = vsel %vm2596, %v2513, %v2640
  %v2642 = vsel %vm2598, %v2514, %v2641
  %v2643 = vsel %vm2600, %v2515, %v2642
  %v2644 = vsel %vm2588, %v2517, %v2516
  %v2645 = vsel %vm2590, %v2518, %v2644
  %v2646 = vsel %vm2592, %v2519, %v2645
  %v2647 = vsel %vm2594, %v2520, %v2646
  %v2648 = vsel %vm2596, %v2521, %v2647
  %v2649 = vsel %vm2598, %v2522, %v2648
  %v2650 = vsel %vm2600, %v2523, %v2649
  %v2651 = vsel %vm2588, %v2525, %v2524
  %v2652 = vsel %vm2590, %v2526, %v2651
  %v2653 = vsel %vm2592, %v2527, %v2652
  %v2654 = vsel %vm2594, %v2528, %v2653
  %v2655 = vsel %vm2596, %v2529, %v2654
  %v2656 = vsel %vm2598, %v2530, %v2655
  %v2657 = vsel %vm2600, %v2531, %v2656
  %v2658 = vsel %vm2588, %v2533, %v2532
  %v2659 = vsel %vm2590, %v2534, %v2658
  %v2660 = vsel %vm2592, %v2535, %v2659
  %v2661 = vsel %vm2594, %v2536, %v2660
  %v2662 = vsel %vm2596, %v2537, %v2661
  %v2663 = vsel %vm2598, %v2538, %v2662
  %v2664 = vsel %vm2600, %v2539, %v2663
  %v2665 = vsel %vm2588, %v2541, %v2540
  %v2666 = vsel %vm2590, %v2542, %v2665
  %v2667 = vsel %vm2592, %v2543, %v2666
  %v2668 = vsel %vm2594, %v2544, %v2667
  %v2669 = vsel %vm2596, %v2545, %v2668
  %v2670 = vsel %vm2598, %v2546, %v2669
  %v2671 = vsel %vm2600, %v2547, %v2670
  %v2672 = vsel %vm2588, %v2549, %v2548
  %v2673 = vsel %vm2590, %v2550, %v2672
  %v2674 = vsel %vm2592, %v2551, %v2673
  %v2675 = vsel %vm2594, %v2552, %v2674
  %v2676 = vsel %vm2596, %v2553, %v2675
  %v2677 = vsel %vm2598, %v2554, %v2676
  %v2678 = vsel %vm2600, %v2555, %v2677
  %v2679 = vsel %vm2588, %v2557, %v2556
  %v2680 = vsel %vm2590, %v2558, %v2679
  %v2681 = vsel %vm2592, %v2559, %v2680
  %v2682 = vsel %vm2594, %v2560, %v2681
  %v2683 = vsel %vm2596, %v2561, %v2682
  %v2684 = vsel %vm2598, %v2562, %v2683
  %v2685 = vsel %vm2600, %v2563, %v2684
  %v2686 = vsel %vm2588, %v2565, %v2564
  %v2687 = vsel %vm2590, %v2566, %v2686
  %v2688 = vsel %vm2592, %v2567, %v2687
  %v2689 = vsel %vm2594, %v2568, %v2688
  %v2690 = vsel %vm2596, %v2569, %v2689
  %v2691 = vsel %vm2598, %v2570, %v2690
  %v2692 = vsel %vm2600, %v2571, %v2691
  %v2693 = vsel %vm2588, %v2573, %v2572
  %v2694 = vsel %vm2590, %v2574, %v2693
  %v2695 = vsel %vm2592, %v2575, %v2694
  %v2696 = vsel %vm2594, %v2576, %v2695
  %v2697 = vsel %vm2596, %v2577, %v2696
  %v2698 = vsel %vm2598, %v2578, %v2697
  %v2699 = vsel %vm2600, %v2579, %v2698
  %v2700 = vsel %vm2588, %v2581, %v2580
  %v2701 = vsel %vm2590, %v2582, %v2700
  %v2702 = vsel %vm2592, %v2583, %v2701
  %v2703 = vsel %vm2594, %v2584, %v2702
  %v2704 = vsel %vm2596, %v2585, %v2703
  %v2705 = vsel %vm2598, %v2586, %v2704
  %v2706 = vsel %vm2600, %v2587, %v2705
  %2723 = vst [vmem:[%s4] sm:$0xff] %v2601
  %2724 = vst [vmem:[%s4 + $0x8] sm:$0xff] %v2608
  %2725 = vst [vmem:[%s4 + $0x10] sm:$0xff] %v2615
  %2726 = vst [vmem:[%s4 + $0x18] sm:$0xff] %v2622
  %2727 = vst [vmem:[%s4 + $0x20] sm:$0xff] %v2629
  %2728 = vst [vmem:[%s4 + $0x28] sm:$0xff] %v2636
  %2729 = vst [vmem:[%s4 + $0x30] sm:$0xff] %v2643
  %2730 = vst [vmem:[%s4 + $0x38] sm:$0xff] %v2650
  %2731 = vst [vmem:[%s4 + $0x40] sm:$0xff] %v2657
  %2732 = vst [vmem:[%s4 + $0x48] sm:$0xff] %v2664
  %2733 = vst [vmem:[%s4 + $0x50] sm:$0xff] %v2671
  %2734 = vst [vmem:[%s4 + $0x58] sm:$0xff] %v2678
  %2735 = vst [vmem:[%s4 + $0x60] sm:$0xff] %v2685
  %2736 = vst [vmem:[%s4 + $0x68] sm:$0xff] %v2692
  %2737 = vst [vmem:[%s4 + $0x70] sm:$0xff] %v2699
  %2738 = vst [vmem:[%s4 + $0x78] sm:$0xff] %v2706
  // Predicated region
  $region18: #{conv_block_forward.3} parent=0 // pred_check
    _
  $region19: #{conv_block_forward.3} parent=0 // pred_check_branch
    %2740 = sbr.rel (0) target = $region21
  $region20: #{conv_block_forward.3} parent=0 // pred_region
    _
  $region21: #{conv_block_forward.3} parent=0 // pred_fallthru
    _
  // Predicated region
  $region22: #{conv_block_forward.3} parent=0 // pred_check
    _
  $region23: #{conv_block_forward.3} parent=0 // pred_check_branch
    %2742 = sbr.rel (0) target = $region25
  $region24: #{conv_block_forward.3} parent=0 // pred_region
    _
  $region25: #{conv_block_forward.3} parent=0 // pred_fallthru
    _

</llo_original>
